<compile_context>
chip_gen: v6e
topology: v6e:2x2x1
jax: 0.10.0
libtpu: 0.0.40
codegen_flags: <defaults>
</compile_context>

<pallas_src>
import functools
import math

import jax
import jax.numpy as jnp
from jax import lax
from jax.experimental import pallas as pl
from jax.experimental.pallas import tpu as pltpu


def _round_up(x, m):
    return (x + m - 1) // m * m


def _vmem_capacity_bytes():
    """Physical VMEM capacity, with a conservative (v7x) fallback."""
    try:
        return int(pltpu.get_tpu_info().vmem_capacity_bytes)
    except Exception:
        return 64 * 1024 * 1024


def _pick_time_chunk(tb, hp, budget_bytes, max_time_chunk):
    """Largest tt <= max_time_chunk whose pipeline buffers fit `budget_bytes`.

    Accounts for double-buffered gx (bf16) and fhg (f32) chunks plus the
    chunk-invariant W_hh / h0 / c0 blocks and the h/c scratch.
    """
    const = (
        2 * hp * 4 * hp * 4        # W_hh^T, double-buffered, f32
        + 2 * 2 * tb * hp * 4      # h0, c0, double-buffered, f32
        + 2 * tb * hp * 4          # h / c scratch, f32
    )
    per_t = (
        2 * tb * 4 * hp * 2        # gx chunk, double-buffered, bf16
        + 2 * tb * 3 * hp * 4      # fhg chunk, double-buffered, f32
    )
    tt = (budget_bytes - const) // max(per_t, 1)
    return int(max(1, min(max_time_chunk, tt)))


def lstm_kernel(gx_ref, whh_ref, h0_ref, c0_ref,
                fhg_ref, o_ref,
                h_state, c_state,
                *, hidden, chunk, last_chunk, last_in, unroll):
    """One grid step = `chunk` timesteps of one batch tile.

    Grid = (batch_tiles [parallel], time_chunks [arbitrary / sequential]).
    """
    H = hidden
    c_idx = pl.program_id(1)

    # Initialize recurrent state from (h0, c0) on the first chunk of each tile.
    @pl.when(c_idx == 0)
    def _():
        h_state[...] = h0_ref[...]
        c_state[...] = c0_ref[...]

    # Recurrent weight resident for the whole chunk (f32 operands, f32 acc).
    whh = whh_ref[...]                                      # (H, 4H)

    def step(t, carry):
        h, c, o_keep = carry
        # gates_x already holds x_t @ W_ih^T + (b_ih + b_hh), stored bf16.
        gates = gx_ref[t].astype(jnp.float32) + jnp.dot(
            h, whh, preferred_element_type=jnp.float32)     # (TB, 4H) f32

        # PyTorch gate order (chunk(4, 1)): ingate, forgetgate, cellgate, outgate.
        # ingate + forgetgate fused into one wide sigmoid over [0, 2H).
        sig_if = jax.nn.sigmoid(gates[:, 0:2 * H])
        ingate = sig_if[:, 0:H]
        forgetgate = sig_if[:, H:2 * H]
        cellgate = jnp.tanh(gates[:, 2 * H:3 * H])
        outgate = jax.nn.sigmoid(gates[:, 3 * H:4 * H])

        c_new = forgetgate * c + ingate * cellgate
        h_new = outgate * jnp.tanh(c_new)

        # Direct lane-aligned slice stores (H % 128 == 0): no concat temporary.
        fhg_ref[t, :, 0 * H:1 * H] = forgetgate
        fhg_ref[t, :, 1 * H:2 * H] = h_new
        fhg_ref[t, :, 2 * H:3 * H] = cellgate

        # Keep the outgate of the last *real* timestep (time may be padded).
        o_keep = jnp.where(t == last_in, outgate, o_keep)
        return h_new, c_new, o_keep

    init = (h_state[...], c_state[...], jnp.zeros(h_state.shape, jnp.float32))
    h_fin, c_fin, o_fin = lax.fori_loop(0, chunk, step, init, unroll=unroll)

    # Carry recurrent state to the next chunk.
    h_state[...] = h_fin
    c_state[...] = c_fin

    # Resident output: only the final (real) timestep's outgate is needed.
    @pl.when(c_idx == last_chunk)
    def _():
        o_ref[...] = o_fin


def lstm_forward(x_btd, w_ih, w_hh, b_ih, b_hh, h0, c0, *, max_time_chunk=8):
    """Matches LSTM.forward: returns (forgetgates, hiddens, cellgates, outgate).

    x_btd: (B, T, D) float32 (batch-first, as in the PyTorch forward)
    w_ih:  (4H, D), w_hh: (4H, H), b_ih/b_hh: (4H,)
    h0/c0: (B, H)
    """
    B, T, D = x_btd.shape
    H = w_hh.shape[1]

    # ---- Lane/sublane-aligned padded sizes ---------------------------------
    Hp = _round_up(H, 128)            # whole-vreg gate slices & output slab
    Bp = _round_up(B, 8)
    Gp = 4 * Hp

    # ---- Pad parameters gate-block-wise (padded rows/cols are zero, so the
    # padded hidden lanes stay exactly zero through the recurrence) ----------
    def pad_gate_rows(w, cols):
        out = jnp.zeros((Gp, cols), jnp.float32)
        for g in range(4):
            out = out.at[g * Hp:g * Hp + H, :w.shape[1]].set(
                w[g * H:(g + 1) * H].astype(jnp.float32))
        return out

    w_ih_p = pad_gate_rows(w_ih, D)                          # (4Hp, D)
    w_hh_p = pad_gate_rows(w_hh, Hp)                         # (4Hp, Hp)
    bias = (b_ih + b_hh).astype(jnp.float32)
    bias_p = jnp.zeros((Gp,), jnp.float32)
    for g in range(4):
        bias_p = bias_p.at[g * Hp:g * Hp + H].set(bias[g * H:(g + 1) * H])

    h0_p = jnp.zeros((Bp, Hp), jnp.float32).at[:B, :H].set(h0.astype(jnp.float32))
    c0_p = jnp.zeros((Bp, Hp), jnp.float32).at[:B, :H].set(c0.astype(jnp.float32))
    x_p = jnp.zeros((Bp, T, D), jnp.float32).at[:B].set(x_btd.astype(jnp.float32))

    # ---- Batch tiling (parallel axis; 2 tiles feed v7x's two TensorCores) --
    if Bp >= 16 and (Bp // 2) % 8 == 0:
        TB = Bp // 2
    else:
        TB = Bp
    num_btiles = Bp // TB

    # ---- Time chunk derived from VMEM capacity; pad T (never fall to tt=1) -
    vmem_cap = _vmem_capacity_bytes()
    tt = _pick_time_chunk(TB, Hp, int(0.75 * vmem_cap), max_time_chunk)
    tt = max(1, min(tt, T))
    T_pad = _round_up(T, tt)
    num_chunks = T_pad // tt
    last_chunk = num_chunks - 1
    last_in = (T - 1) % tt

    # Full unroll for small tiles; cap for production tiles to avoid spill.
    unroll = True if TB * Hp <= 16 * 1024 else min(4, tt)

    # ---- Hoisted input projection for all timesteps (one big f32 matmul,
    # produced directly time-major; result stored bf16 for streaming) --------
    #   gates_x[t, b] = x[b, t] @ W_ih^T + (b_ih + b_hh)   -> (T, Bp, 4Hp)
    gx = jnp.einsum('btd,gd->tbg', x_p, w_ih_p,
                    preferred_element_type=jnp.float32) + bias_p[None, None, :]
    gx = gx.astype(jnp.bfloat16)
    if T_pad != T:
        gx = jnp.concatenate(
            [gx, jnp.zeros((T_pad - T, Bp, Gp), jnp.bfloat16)], axis=0)

    whh_t = jnp.transpose(w_hh_p)                            # (Hp, 4Hp) f32

    kern = functools.partial(
        lstm_kernel, hidden=Hp, chunk=tt,
        last_chunk=last_chunk, last_in=last_in, unroll=unroll)

    fhg_tb, o_bh = pl.pallas_call(
        kern,
        out_shape=(
            jax.ShapeDtypeStruct((T_pad, Bp, 3 * Hp), jnp.float32),  # [f|h|g]
            jax.ShapeDtypeStruct((Bp, Hp), jnp.float32),             # last outgate
        ),
        grid_spec=pltpu.PrefetchScalarGridSpec(
            num_scalar_prefetch=0,
            grid=(num_btiles, num_chunks),
            in_specs=[
                pl.BlockSpec((tt, TB, Gp), lambda b, c: (c, b, 0)),  # gates_x
                pl.BlockSpec((Hp, Gp), lambda b, c: (0, 0)),         # W_hh^T
                pl.BlockSpec((TB, Hp), lambda b, c: (b, 0)),         # h0
                pl.BlockSpec((TB, Hp), lambda b, c: (b, 0)),         # c0
            ],
            out_specs=[
                pl.BlockSpec((tt, TB, 3 * Hp), lambda b, c: (c, b, 0)),
                pl.BlockSpec((TB, Hp), lambda b, c: (b, 0)),
            ],
            scratch_shapes=[
                pltpu.VMEM((TB, Hp), jnp.float32),   # h state (f32)
                pltpu.VMEM((TB, Hp), jnp.float32),   # c state (f32)
            ],
        ),
        compiler_params=pltpu.CompilerParams(
            # Batch tiles are independent (megacore-parallel); the time
            # recurrence is sequential.
            dimension_semantics=("parallel", "arbitrary"),
            vmem_limit_bytes=min(int(0.85 * vmem_cap), 128 * 1024 * 1024),
        ),
    )(gx, whh_t, h0_p, c0_p)

    # Split the merged slab, drop padding, return PyTorch's (B, T, H) layout.
    fhg_bt = jnp.transpose(fhg_tb, (1, 0, 2))                # (Bp, T_pad, 3Hp)
    forgetgates = fhg_bt[:B, :T, 0 * Hp:0 * Hp + H]
    hiddens = fhg_bt[:B, :T, 1 * Hp:1 * Hp + H]
    cellgates = fhg_bt[:B, :T, 2 * Hp:2 * Hp + H]
    outgate = o_bh[:B, :H]
    return forgetgates, hiddens, cellgates, outgate


def lstm_ref(x, w_ih, w_hh, b_ih, b_hh, h0, c0):
    """Pure-JAX f32 reference mirroring the PyTorch forward loop."""
    B, T, D = x.shape
    H = w_hh.shape[1]
    hx, cx = h0, c0
    fs, hs, gs = [], [], []
    og = None
    for t in range(T):
        gates = (x[:, t, :] @ w_ih.T + b_ih) + (hx @ w_hh.T + b_hh)
        i = jax.nn.sigmoid(gates[:, 0 * H:1 * H])
        f = jax.nn.sigmoid(gates[:, 1 * H:2 * H])
        g = jnp.tanh(gates[:, 2 * H:3 * H])
        o = jax.nn.sigmoid(gates[:, 3 * H:4 * H])
        cx = f * cx + i * g
        hx = o * jnp.tanh(cx)
        fs.append(f)
        hs.append(hx)
        gs.append(g)
        og = o
    return jnp.stack(fs, 1), jnp.stack(hs, 1), jnp.stack(gs, 1), og


if __name__ == "__main__":
    B, T, D, H = 4, 8, 16, 32

    key = jax.random.PRNGKey(0)
    k_x, k_h, k_c, k_wih, k_whh, k_bih, k_bhh = jax.random.split(key, 7)

    # Deterministic parameter init matching reset_parameters(): U(-stdv, stdv).
    stdv = 1.0 / math.sqrt(H)
    w_ih = jax.random.uniform(k_wih, (4 * H, D), jnp.float32, -stdv, stdv)
    w_hh = jax.random.uniform(k_whh, (4 * H, H), jnp.float32, -stdv, stdv)
    b_ih = jax.random.uniform(k_bih, (4 * H,), jnp.float32, -stdv, stdv)
    b_hh = jax.random.uniform(k_bhh, (4 * H,), jnp.float32, -stdv, stdv)

    x = jax.random.normal(k_x, (B, T, D), jnp.float32)
    h0 = jax.random.normal(k_h, (B, H), jnp.float32)
    c0 = jax.random.normal(k_c, (B, H), jnp.float32)

    outs = lstm_forward(x, w_ih, w_hh, b_ih, b_hh, h0, c0)
    outs = jax.block_until_ready(outs)
    forgetgates, hiddens, cellgates, outgate = outs

    # Shape checks (PyTorch semantics).
    assert forgetgates.shape == (B, T, H)
    assert hiddens.shape == (B, T, H)
    assert cellgates.shape == (B, T, H)
    assert outgate.shape == (B, H)

    # Numerical check against pure-JAX f32 reference.  All matmuls are f32;
    # only the streamed gates_x slab is stored bf16, so error stays small.
    ref = lstm_ref(x, w_ih, w_hh, b_ih, b_hh, h0, c0)
    for got, want in zip(outs, ref):
        assert jnp.allclose(got, want, rtol=2e-2, atol=2e-2), "mismatch vs ref"

    print("KERNEL_OK")
</pallas_src>

<mosaic_0001>
module attributes {stable_mosaic.version = 11 : i64} {
  func.func @lstm_kernel(%arg0: i32, %arg1: i32, %arg2: memref<8x8x512xbf16, #tpu.memory_space<vmem>>, %arg3: memref<128x512xf32, #tpu.memory_space<vmem>>, %arg4: memref<8x128xf32, #tpu.memory_space<vmem>>, %arg5: memref<8x128xf32, #tpu.memory_space<vmem>>, %arg6: memref<8x8x384xf32, #tpu.memory_space<vmem>>, %arg7: memref<8x128xf32, #tpu.memory_space<vmem>>, %arg8: memref<8x128xf32, #tpu.memory_space<vmem>>, %arg9: memref<8x128xf32, #tpu.memory_space<vmem>>) attributes {dimension_semantics = [#tpu.dimension_semantics<parallel>, #tpu.dimension_semantics<arbitrary>], iteration_bounds = array<i64: 1, 1>, scalar_prefetch = 0 : i64, scratch_operands = 2 : i64, tpu.core_type = #tpu.core_type<tc>, window_params = [{transform_indices = @transform_0, window_bounds = array<i64: 8, 8, 512>}, {pipeline_mode = #tpu.pipeline_mode<synchronous>, transform_indices = @transform_1, window_bounds = array<i64: 128, 512>}, {transform_indices = @transform_2, window_bounds = array<i64: 8, 128>}, {transform_indices = @transform_3, window_bounds = array<i64: 8, 128>}, {transform_indices = @transform_4, window_bounds = array<i64: 8, 8, 384>}, {transform_indices = @transform_5, window_bounds = array<i64: 8, 128>}]} {
    %c0_i32 = arith.constant 0 : i32
    %0 = arith.cmpi eq, %arg1, %c0_i32 : i32
    %1 = arith.extui %0 : i1 to i32
    %c0_i32_0 = arith.constant 0 : i32
    %2 = arith.cmpi ne, %1, %c0_i32_0 : i32
    scf.if %2 {
      %c0_107 = arith.constant 0 : index
      %c0_108 = arith.constant 0 : index
      %340 = vector.load %arg4[%c0_107, %c0_108] : memref<8x128xf32, #tpu.memory_space<vmem>>, vector<8x128xf32>
      %c0_109 = arith.constant 0 : index
      %c0_110 = arith.constant 0 : index
      %341 = vector.load %arg8[%c0_109, %c0_110] : memref<8x128xf32, #tpu.memory_space<vmem>>, vector<8x128xf32>
      tpu.vector_store %arg8[%c0_109, %c0_110], %340 {strides = array<i32>} : memref<8x128xf32, #tpu.memory_space<vmem>>, vector<8x128xf32>,
      %c0_111 = arith.constant 0 : index
      %c0_112 = arith.constant 0 : index
      %342 = vector.load %arg5[%c0_111, %c0_112] : memref<8x128xf32, #tpu.memory_space<vmem>>, vector<8x128xf32>
      %c0_113 = arith.constant 0 : index
      %c0_114 = arith.constant 0 : index
      %343 = vector.load %arg9[%c0_113, %c0_114] : memref<8x128xf32, #tpu.memory_space<vmem>>, vector<8x128xf32>
      tpu.vector_store %arg9[%c0_113, %c0_114], %342 {strides = array<i32>} : memref<8x128xf32, #tpu.memory_space<vmem>>, vector<8x128xf32>,
    } else {
    }
    %c0 = arith.constant 0 : index
    %c0_1 = arith.constant 0 : index
    %3 = vector.load %arg3[%c0, %c0_1] : memref<128x512xf32, #tpu.memory_space<vmem>>, vector<128x512xf32>
    %c0_2 = arith.constant 0 : index
    %c0_3 = arith.constant 0 : index
    %4 = vector.load %arg8[%c0_2, %c0_3] : memref<8x128xf32, #tpu.memory_space<vmem>>, vector<8x128xf32>
    %c0_4 = arith.constant 0 : index
    %c0_5 = arith.constant 0 : index
    %5 = vector.load %arg9[%c0_4, %c0_5] : memref<8x128xf32, #tpu.memory_space<vmem>>, vector<8x128xf32>
    %cst = arith.constant 0.000000e+00 : f32
    %6 = vector.broadcast %cst : f32 to vector<8x128xf32>
    %c0_i32_6 = arith.constant 0 : i32
    %7 = arith.index_cast %c0_i32_6 : i32 to index
    %c0_7 = arith.constant 0 : index
    %c0_8 = arith.constant 0 : index
    %8 = vector.load %arg2[%7, %c0_7, %c0_8] : memref<8x8x512xbf16, #tpu.memory_space<vmem>>, vector<1x8x512xbf16>
    %9 = vector.shape_cast %8 : vector<1x8x512xbf16> to vector<8x512xbf16>
    %10 = arith.extf %9 : vector<8x512xbf16> to vector<8x512xf32>
    %cst_9 = arith.constant dense<0.000000e+00> : vector<8x512xf32>
    %11 = tpu.matmul %4, %3, %cst_9 {dimension_numbers = #tpu.dot_dimension_numbers<[1], [0], [0], [1], [0, 0, 1, 1], [], []>} : vector<8x128xf32>, vector<128x512xf32>, vector<8x512xf32> -> vector<8x512xf32>
    %12 = arith.addf %10, %11 : vector<8x512xf32>
    %13 = vector.extract_strided_slice %12 {offsets = [0, 0], sizes = [8, 256], strides = [1, 1]} : vector<8x512xf32> to vector<8x256xf32>
    %14 = arith.negf %13 : vector<8x256xf32>
    %15 = math.exp %14 : vector<8x256xf32>
    %cst_10 = arith.constant 1.000000e+00 : f32
    %16 = vector.broadcast %cst_10 : f32 to vector<8x256xf32>
    %17 = arith.addf %16, %15 : vector<8x256xf32>
    %18 = arith.divf %16, %17 : vector<8x256xf32>
    %19 = vector.extract_strided_slice %18 {offsets = [0, 0], sizes = [8, 128], strides = [1, 1]} : vector<8x256xf32> to vector<8x128xf32>
    %20 = vector.extract_strided_slice %18 {offsets = [0, 128], sizes = [8, 128], strides = [1, 1]} : vector<8x256xf32> to vector<8x128xf32>
    %21 = vector.extract_strided_slice %12 {offsets = [0, 256], sizes = [8, 128], strides = [1, 1]} : vector<8x512xf32> to vector<8x128xf32>
    %22 = math.tanh %21 : vector<8x128xf32>
    %23 = vector.extract_strided_slice %12 {offsets = [0, 384], sizes = [8, 128], strides = [1, 1]} : vector<8x512xf32> to vector<8x128xf32>
    %24 = arith.negf %23 : vector<8x128xf32>
    %25 = math.exp %24 : vector<8x128xf32>
    %cst_11 = arith.constant 1.000000e+00 : f32
    %26 = vector.broadcast %cst_11 : f32 to vector<8x128xf32>
    %27 = arith.addf %26, %25 : vector<8x128xf32>
    %28 = arith.divf %26, %27 : vector<8x128xf32>
    %29 = arith.mulf %20, %5 : vector<8x128xf32>
    %30 = arith.mulf %19, %22 : vector<8x128xf32>
    %31 = arith.addf %29, %30 : vector<8x128xf32>
    %32 = math.tanh %31 : vector<8x128xf32>
    %33 = arith.mulf %28, %32 : vector<8x128xf32>
    %34 = arith.index_cast %c0_i32_6 : i32 to index
    %c0_12 = arith.constant 0 : index
    %c0_13 = arith.constant 0 : index
    %35 = vector.load %arg6[%34, %c0_12, %c0_13] : memref<8x8x384xf32, #tpu.memory_space<vmem>>, vector<1x8x128xf32>
    %36 = vector.shape_cast %35 : vector<1x8x128xf32> to vector<8x128xf32>
    %37 = vector.shape_cast %20 : vector<8x128xf32> to vector<1x8x128xf32>
    tpu.vector_store %arg6[%34, %c0_12, %c0_13], %37 {strides = array<i32>} : memref<8x8x384xf32, #tpu.memory_space<vmem>>, vector<1x8x128xf32>,
    %38 = arith.index_cast %c0_i32_6 : i32 to index
    %c0_14 = arith.constant 0 : index
    %c128 = arith.constant 128 : index
    %39 = vector.load %arg6[%38, %c0_14, %c128] : memref<8x8x384xf32, #tpu.memory_space<vmem>>, vector<1x8x128xf32>
    %40 = vector.shape_cast %39 : vector<1x8x128xf32> to vector<8x128xf32>
    %41 = vector.shape_cast %33 : vector<8x128xf32> to vector<1x8x128xf32>
    tpu.vector_store %arg6[%38, %c0_14, %c128], %41 {strides = array<i32>} : memref<8x8x384xf32, #tpu.memory_space<vmem>>, vector<1x8x128xf32>,
    %42 = arith.index_cast %c0_i32_6 : i32 to index
    %c0_15 = arith.constant 0 : index
    %c256 = arith.constant 256 : index
    %43 = vector.load %arg6[%42, %c0_15, %c256] : memref<8x8x384xf32, #tpu.memory_space<vmem>>, vector<1x8x128xf32>
    %44 = vector.shape_cast %43 : vector<1x8x128xf32> to vector<8x128xf32>
    %45 = vector.shape_cast %22 : vector<8x128xf32> to vector<1x8x128xf32>
    tpu.vector_store %arg6[%42, %c0_15, %c256], %45 {strides = array<i32>} : memref<8x8x384xf32, #tpu.memory_space<vmem>>, vector<1x8x128xf32>,
    %c7_i32 = arith.constant 7 : i32
    %46 = arith.cmpi eq, %c0_i32_6, %c7_i32 : i32
    %47 = arith.select %46, %28, %6 : vector<8x128xf32>
    %c1_i32 = arith.constant 1 : i32
    %48 = arith.index_cast %c1_i32 : i32 to index
    %c0_16 = arith.constant 0 : index
    %c0_17 = arith.constant 0 : index
    %49 = vector.load %arg2[%48, %c0_16, %c0_17] : memref<8x8x512xbf16, #tpu.memory_space<vmem>>, vector<1x8x512xbf16>
    %50 = vector.shape_cast %49 : vector<1x8x512xbf16> to vector<8x512xbf16>
    %51 = arith.extf %50 : vector<8x512xbf16> to vector<8x512xf32>
    %cst_18 = arith.constant dense<0.000000e+00> : vector<8x512xf32>
    %52 = tpu.matmul %33, %3, %cst_18 {dimension_numbers = #tpu.dot_dimension_numbers<[1], [0], [0], [1], [0, 0, 1, 1], [], []>} : vector<8x128xf32>, vector<128x512xf32>, vector<8x512xf32> -> vector<8x512xf32>
    %53 = arith.addf %51, %52 : vector<8x512xf32>
    %54 = vector.extract_strided_slice %53 {offsets = [0, 0], sizes = [8, 256], strides = [1, 1]} : vector<8x512xf32> to vector<8x256xf32>
    %55 = arith.negf %54 : vector<8x256xf32>
    %56 = math.exp %55 : vector<8x256xf32>
    %cst_19 = arith.constant 1.000000e+00 : f32
    %57 = vector.broadcast %cst_19 : f32 to vector<8x256xf32>
    %58 = arith.addf %57, %56 : vector<8x256xf32>
    %59 = arith.divf %57, %58 : vector<8x256xf32>
    %60 = vector.extract_strided_slice %59 {offsets = [0, 0], sizes = [8, 128], strides = [1, 1]} : vector<8x256xf32> to vector<8x128xf32>
    %61 = vector.extract_strided_slice %59 {offsets = [0, 128], sizes = [8, 128], strides = [1, 1]} : vector<8x256xf32> to vector<8x128xf32>
    %62 = vector.extract_strided_slice %53 {offsets = [0, 256], sizes = [8, 128], strides = [1, 1]} : vector<8x512xf32> to vector<8x128xf32>
    %63 = math.tanh %62 : vector<8x128xf32>
    %64 = vector.extract_strided_slice %53 {offsets = [0, 384], sizes = [8, 128], strides = [1, 1]} : vector<8x512xf32> to vector<8x128xf32>
    %65 = arith.negf %64 : vector<8x128xf32>
    %66 = math.exp %65 : vector<8x128xf32>
    %cst_20 = arith.constant 1.000000e+00 : f32
    %67 = vector.broadcast %cst_20 : f32 to vector<8x128xf32>
    %68 = arith.addf %67, %66 : vector<8x128xf32>
    %69 = arith.divf %67, %68 : vector<8x128xf32>
    %70 = arith.mulf %61, %31 : vector<8x128xf32>
    %71 = arith.mulf %60, %63 : vector<8x128xf32>
    %72 = arith.addf %70, %71 : vector<8x128xf32>
    %73 = math.tanh %72 : vector<8x128xf32>
    %74 = arith.mulf %69, %73 : vector<8x128xf32>
    %75 = arith.index_cast %c1_i32 : i32 to index
    %c0_21 = arith.constant 0 : index
    %c0_22 = arith.constant 0 : index
    %76 = vector.load %arg6[%75, %c0_21, %c0_22] : memref<8x8x384xf32, #tpu.memory_space<vmem>>, vector<1x8x128xf32>
    %77 = vector.shape_cast %76 : vector<1x8x128xf32> to vector<8x128xf32>
    %78 = vector.shape_cast %61 : vector<8x128xf32> to vector<1x8x128xf32>
    tpu.vector_store %arg6[%75, %c0_21, %c0_22], %78 {strides = array<i32>} : memref<8x8x384xf32, #tpu.memory_space<vmem>>, vector<1x8x128xf32>,
    %79 = arith.index_cast %c1_i32 : i32 to index
    %c0_23 = arith.constant 0 : index
    %c128_24 = arith.constant 128 : index
    %80 = vector.load %arg6[%79, %c0_23, %c128_24] : memref<8x8x384xf32, #tpu.memory_space<vmem>>, vector<1x8x128xf32>
    %81 = vector.shape_cast %80 : vector<1x8x128xf32> to vector<8x128xf32>
    %82 = vector.shape_cast %74 : vector<8x128xf32> to vector<1x8x128xf32>
    tpu.vector_store %arg6[%79, %c0_23, %c128_24], %82 {strides = array<i32>} : memref<8x8x384xf32, #tpu.memory_space<vmem>>, vector<1x8x128xf32>,
    %83 = arith.index_cast %c1_i32 : i32 to index
    %c0_25 = arith.constant 0 : index
    %c256_26 = arith.constant 256 : index
    %84 = vector.load %arg6[%83, %c0_25, %c256_26] : memref<8x8x384xf32, #tpu.memory_space<vmem>>, vector<1x8x128xf32>
    %85 = vector.shape_cast %84 : vector<1x8x128xf32> to vector<8x128xf32>
    %86 = vector.shape_cast %63 : vector<8x128xf32> to vector<1x8x128xf32>
    tpu.vector_store %arg6[%83, %c0_25, %c256_26], %86 {strides = array<i32>} : memref<8x8x384xf32, #tpu.memory_space<vmem>>, vector<1x8x128xf32>,
    %c7_i32_27 = arith.constant 7 : i32
    %87 = arith.cmpi eq, %c1_i32, %c7_i32_27 : i32
    %88 = arith.select %87, %69, %47 : vector<8x128xf32>
    %c2_i32 = arith.constant 2 : i32
    %89 = arith.index_cast %c2_i32 : i32 to index
    %c0_28 = arith.constant 0 : index
    %c0_29 = arith.constant 0 : index
    %90 = vector.load %arg2[%89, %c0_28, %c0_29] : memref<8x8x512xbf16, #tpu.memory_space<vmem>>, vector<1x8x512xbf16>
    %91 = vector.shape_cast %90 : vector<1x8x512xbf16> to vector<8x512xbf16>
    %92 = arith.extf %91 : vector<8x512xbf16> to vector<8x512xf32>
    %cst_30 = arith.constant dense<0.000000e+00> : vector<8x512xf32>
    %93 = tpu.matmul %74, %3, %cst_30 {dimension_numbers = #tpu.dot_dimension_numbers<[1], [0], [0], [1], [0, 0, 1, 1], [], []>} : vector<8x128xf32>, vector<128x512xf32>, vector<8x512xf32> -> vector<8x512xf32>
    %94 = arith.addf %92, %93 : vector<8x512xf32>
    %95 = vector.extract_strided_slice %94 {offsets = [0, 0], sizes = [8, 256], strides = [1, 1]} : vector<8x512xf32> to vector<8x256xf32>
    %96 = arith.negf %95 : vector<8x256xf32>
    %97 = math.exp %96 : vector<8x256xf32>
    %cst_31 = arith.constant 1.000000e+00 : f32
    %98 = vector.broadcast %cst_31 : f32 to vector<8x256xf32>
    %99 = arith.addf %98, %97 : vector<8x256xf32>
    %100 = arith.divf %98, %99 : vector<8x256xf32>
    %101 = vector.extract_strided_slice %100 {offsets = [0, 0], sizes = [8, 128], strides = [1, 1]} : vector<8x256xf32> to vector<8x128xf32>
    %102 = vector.extract_strided_slice %100 {offsets = [0, 128], sizes = [8, 128], strides = [1, 1]} : vector<8x256xf32> to vector<8x128xf32>
    %103 = vector.extract_strided_slice %94 {offsets = [0, 256], sizes = [8, 128], strides = [1, 1]} : vector<8x512xf32> to vector<8x128xf32>
    %104 = math.tanh %103 : vector<8x128xf32>
    %105 = vector.extract_strided_slice %94 {offsets = [0, 384], sizes = [8, 128], strides = [1, 1]} : vector<8x512xf32> to vector<8x128xf32>
    %106 = arith.negf %105 : vector<8x128xf32>
    %107 = math.exp %106 : vector<8x128xf32>
    %cst_32 = arith.constant 1.000000e+00 : f32
    %108 = vector.broadcast %cst_32 : f32 to vector<8x128xf32>
    %109 = arith.addf %108, %107 : vector<8x128xf32>
    %110 = arith.divf %108, %109 : vector<8x128xf32>
    %111 = arith.mulf %102, %72 : vector<8x128xf32>
    %112 = arith.mulf %101, %104 : vector<8x128xf32>
    %113 = arith.addf %111, %112 : vector<8x128xf32>
    %114 = math.tanh %113 : vector<8x128xf32>
    %115 = arith.mulf %110, %114 : vector<8x128xf32>
    %116 = arith.index_cast %c2_i32 : i32 to index
    %c0_33 = arith.constant 0 : index
    %c0_34 = arith.constant 0 : index
    %117 = vector.load %arg6[%116, %c0_33, %c0_34] : memref<8x8x384xf32, #tpu.memory_space<vmem>>, vector<1x8x128xf32>
    %118 = vector.shape_cast %117 : vector<1x8x128xf32> to vector<8x128xf32>
    %119 = vector.shape_cast %102 : vector<8x128xf32> to vector<1x8x128xf32>
    tpu.vector_store %arg6[%116, %c0_33, %c0_34], %119 {strides = array<i32>} : memref<8x8x384xf32, #tpu.memory_space<vmem>>, vector<1x8x128xf32>,
    %120 = arith.index_cast %c2_i32 : i32 to index
    %c0_35 = arith.constant 0 : index
    %c128_36 = arith.constant 128 : index
    %121 = vector.load %arg6[%120, %c0_35, %c128_36] : memref<8x8x384xf32, #tpu.memory_space<vmem>>, vector<1x8x128xf32>
    %122 = vector.shape_cast %121 : vector<1x8x128xf32> to vector<8x128xf32>
    %123 = vector.shape_cast %115 : vector<8x128xf32> to vector<1x8x128xf32>
    tpu.vector_store %arg6[%120, %c0_35, %c128_36], %123 {strides = array<i32>} : memref<8x8x384xf32, #tpu.memory_space<vmem>>, vector<1x8x128xf32>,
    %124 = arith.index_cast %c2_i32 : i32 to index
    %c0_37 = arith.constant 0 : index
    %c256_38 = arith.constant 256 : index
    %125 = vector.load %arg6[%124, %c0_37, %c256_38] : memref<8x8x384xf32, #tpu.memory_space<vmem>>, vector<1x8x128xf32>
    %126 = vector.shape_cast %125 : vector<1x8x128xf32> to vector<8x128xf32>
    %127 = vector.shape_cast %104 : vector<8x128xf32> to vector<1x8x128xf32>
    tpu.vector_store %arg6[%124, %c0_37, %c256_38], %127 {strides = array<i32>} : memref<8x8x384xf32, #tpu.memory_space<vmem>>, vector<1x8x128xf32>,
    %c7_i32_39 = arith.constant 7 : i32
    %128 = arith.cmpi eq, %c2_i32, %c7_i32_39 : i32
    %129 = arith.select %128, %110, %88 : vector<8x128xf32>
    %c3_i32 = arith.constant 3 : i32
    %130 = arith.index_cast %c3_i32 : i32 to index
    %c0_40 = arith.constant 0 : index
    %c0_41 = arith.constant 0 : index
    %131 = vector.load %arg2[%130, %c0_40, %c0_41] : memref<8x8x512xbf16, #tpu.memory_space<vmem>>, vector<1x8x512xbf16>
    %132 = vector.shape_cast %131 : vector<1x8x512xbf16> to vector<8x512xbf16>
    %133 = arith.extf %132 : vector<8x512xbf16> to vector<8x512xf32>
    %cst_42 = arith.constant dense<0.000000e+00> : vector<8x512xf32>
    %134 = tpu.matmul %115, %3, %cst_42 {dimension_numbers = #tpu.dot_dimension_numbers<[1], [0], [0], [1], [0, 0, 1, 1], [], []>} : vector<8x128xf32>, vector<128x512xf32>, vector<8x512xf32> -> vector<8x512xf32>
    %135 = arith.addf %133, %134 : vector<8x512xf32>
    %136 = vector.extract_strided_slice %135 {offsets = [0, 0], sizes = [8, 256], strides = [1, 1]} : vector<8x512xf32> to vector<8x256xf32>
    %137 = arith.negf %136 : vector<8x256xf32>
    %138 = math.exp %137 : vector<8x256xf32>
    %cst_43 = arith.constant 1.000000e+00 : f32
    %139 = vector.broadcast %cst_43 : f32 to vector<8x256xf32>
    %140 = arith.addf %139, %138 : vector<8x256xf32>
    %141 = arith.divf %139, %140 : vector<8x256xf32>
    %142 = vector.extract_strided_slice %141 {offsets = [0, 0], sizes = [8, 128], strides = [1, 1]} : vector<8x256xf32> to vector<8x128xf32>
    %143 = vector.extract_strided_slice %141 {offsets = [0, 128], sizes = [8, 128], strides = [1, 1]} : vector<8x256xf32> to vector<8x128xf32>
    %144 = vector.extract_strided_slice %135 {offsets = [0, 256], sizes = [8, 128], strides = [1, 1]} : vector<8x512xf32> to vector<8x128xf32>
    %145 = math.tanh %144 : vector<8x128xf32>
    %146 = vector.extract_strided_slice %135 {offsets = [0, 384], sizes = [8, 128], strides = [1, 1]} : vector<8x512xf32> to vector<8x128xf32>
    %147 = arith.negf %146 : vector<8x128xf32>
    %148 = math.exp %147 : vector<8x128xf32>
    %cst_44 = arith.constant 1.000000e+00 : f32
    %149 = vector.broadcast %cst_44 : f32 to vector<8x128xf32>
    %150 = arith.addf %149, %148 : vector<8x128xf32>
    %151 = arith.divf %149, %150 : vector<8x128xf32>
    %152 = arith.mulf %143, %113 : vector<8x128xf32>
    %153 = arith.mulf %142, %145 : vector<8x128xf32>
    %154 = arith.addf %152, %153 : vector<8x128xf32>
    %155 = math.tanh %154 : vector<8x128xf32>
    %156 = arith.mulf %151, %155 : vector<8x128xf32>
    %157 = arith.index_cast %c3_i32 : i32 to index
    %c0_45 = arith.constant 0 : index
    %c0_46 = arith.constant 0 : index
    %158 = vector.load %arg6[%157, %c0_45, %c0_46] : memref<8x8x384xf32, #tpu.memory_space<vmem>>, vector<1x8x128xf32>
    %159 = vector.shape_cast %158 : vector<1x8x128xf32> to vector<8x128xf32>
    %160 = vector.shape_cast %143 : vector<8x128xf32> to vector<1x8x128xf32>
    tpu.vector_store %arg6[%157, %c0_45, %c0_46], %160 {strides = array<i32>} : memref<8x8x384xf32, #tpu.memory_space<vmem>>, vector<1x8x128xf32>,
    %161 = arith.index_cast %c3_i32 : i32 to index
    %c0_47 = arith.constant 0 : index
    %c128_48 = arith.constant 128 : index
    %162 = vector.load %arg6[%161, %c0_47, %c128_48] : memref<8x8x384xf32, #tpu.memory_space<vmem>>, vector<1x8x128xf32>
    %163 = vector.shape_cast %162 : vector<1x8x128xf32> to vector<8x128xf32>
    %164 = vector.shape_cast %156 : vector<8x128xf32> to vector<1x8x128xf32>
    tpu.vector_store %arg6[%161, %c0_47, %c128_48], %164 {strides = array<i32>} : memref<8x8x384xf32, #tpu.memory_space<vmem>>, vector<1x8x128xf32>,
    %165 = arith.index_cast %c3_i32 : i32 to index
    %c0_49 = arith.constant 0 : index
    %c256_50 = arith.constant 256 : index
    %166 = vector.load %arg6[%165, %c0_49, %c256_50] : memref<8x8x384xf32, #tpu.memory_space<vmem>>, vector<1x8x128xf32>
    %167 = vector.shape_cast %166 : vector<1x8x128xf32> to vector<8x128xf32>
    %168 = vector.shape_cast %145 : vector<8x128xf32> to vector<1x8x128xf32>
    tpu.vector_store %arg6[%165, %c0_49, %c256_50], %168 {strides = array<i32>} : memref<8x8x384xf32, #tpu.memory_space<vmem>>, vector<1x8x128xf32>,
    %c7_i32_51 = arith.constant 7 : i32
    %169 = arith.cmpi eq, %c3_i32, %c7_i32_51 : i32
    %170 = arith.select %169, %151, %129 : vector<8x128xf32>
    %c4_i32 = arith.constant 4 : i32
    %171 = arith.index_cast %c4_i32 : i32 to index
    %c0_52 = arith.constant 0 : index
    %c0_53 = arith.constant 0 : index
    %172 = vector.load %arg2[%171, %c0_52, %c0_53] : memref<8x8x512xbf16, #tpu.memory_space<vmem>>, vector<1x8x512xbf16>
    %173 = vector.shape_cast %172 : vector<1x8x512xbf16> to vector<8x512xbf16>
    %174 = arith.extf %173 : vector<8x512xbf16> to vector<8x512xf32>
    %cst_54 = arith.constant dense<0.000000e+00> : vector<8x512xf32>
    %175 = tpu.matmul %156, %3, %cst_54 {dimension_numbers = #tpu.dot_dimension_numbers<[1], [0], [0], [1], [0, 0, 1, 1], [], []>} : vector<8x128xf32>, vector<128x512xf32>, vector<8x512xf32> -> vector<8x512xf32>
    %176 = arith.addf %174, %175 : vector<8x512xf32>
    %177 = vector.extract_strided_slice %176 {offsets = [0, 0], sizes = [8, 256], strides = [1, 1]} : vector<8x512xf32> to vector<8x256xf32>
    %178 = arith.negf %177 : vector<8x256xf32>
    %179 = math.exp %178 : vector<8x256xf32>
    %cst_55 = arith.constant 1.000000e+00 : f32
    %180 = vector.broadcast %cst_55 : f32 to vector<8x256xf32>
    %181 = arith.addf %180, %179 : vector<8x256xf32>
    %182 = arith.divf %180, %181 : vector<8x256xf32>
    %183 = vector.extract_strided_slice %182 {offsets = [0, 0], sizes = [8, 128], strides = [1, 1]} : vector<8x256xf32> to vector<8x128xf32>
    %184 = vector.extract_strided_slice %182 {offsets = [0, 128], sizes = [8, 128], strides = [1, 1]} : vector<8x256xf32> to vector<8x128xf32>
    %185 = vector.extract_strided_slice %176 {offsets = [0, 256], sizes = [8, 128], strides = [1, 1]} : vector<8x512xf32> to vector<8x128xf32>
    %186 = math.tanh %185 : vector<8x128xf32>
    %187 = vector.extract_strided_slice %176 {offsets = [0, 384], sizes = [8, 128], strides = [1, 1]} : vector<8x512xf32> to vector<8x128xf32>
    %188 = arith.negf %187 : vector<8x128xf32>
    %189 = math.exp %188 : vector<8x128xf32>
    %cst_56 = arith.constant 1.000000e+00 : f32
    %190 = vector.broadcast %cst_56 : f32 to vector<8x128xf32>
    %191 = arith.addf %190, %189 : vector<8x128xf32>
    %192 = arith.divf %190, %191 : vector<8x128xf32>
    %193 = arith.mulf %184, %154 : vector<8x128xf32>
    %194 = arith.mulf %183, %186 : vector<8x128xf32>
    %195 = arith.addf %193, %194 : vector<8x128xf32>
    %196 = math.tanh %195 : vector<8x128xf32>
    %197 = arith.mulf %192, %196 : vector<8x128xf32>
    %198 = arith.index_cast %c4_i32 : i32 to index
    %c0_57 = arith.constant 0 : index
    %c0_58 = arith.constant 0 : index
    %199 = vector.load %arg6[%198, %c0_57, %c0_58] : memref<8x8x384xf32, #tpu.memory_space<vmem>>, vector<1x8x128xf32>
    %200 = vector.shape_cast %199 : vector<1x8x128xf32> to vector<8x128xf32>
    %201 = vector.shape_cast %184 : vector<8x128xf32> to vector<1x8x128xf32>
    tpu.vector_store %arg6[%198, %c0_57, %c0_58], %201 {strides = array<i32>} : memref<8x8x384xf32, #tpu.memory_space<vmem>>, vector<1x8x128xf32>,
    %202 = arith.index_cast %c4_i32 : i32 to index
    %c0_59 = arith.constant 0 : index
    %c128_60 = arith.constant 128 : index
    %203 = vector.load %arg6[%202, %c0_59, %c128_60] : memref<8x8x384xf32, #tpu.memory_space<vmem>>, vector<1x8x128xf32>
    %204 = vector.shape_cast %203 : vector<1x8x128xf32> to vector<8x128xf32>
    %205 = vector.shape_cast %197 : vector<8x128xf32> to vector<1x8x128xf32>
    tpu.vector_store %arg6[%202, %c0_59, %c128_60], %205 {strides = array<i32>} : memref<8x8x384xf32, #tpu.memory_space<vmem>>, vector<1x8x128xf32>,
    %206 = arith.index_cast %c4_i32 : i32 to index
    %c0_61 = arith.constant 0 : index
    %c256_62 = arith.constant 256 : index
    %207 = vector.load %arg6[%206, %c0_61, %c256_62] : memref<8x8x384xf32, #tpu.memory_space<vmem>>, vector<1x8x128xf32>
    %208 = vector.shape_cast %207 : vector<1x8x128xf32> to vector<8x128xf32>
    %209 = vector.shape_cast %186 : vector<8x128xf32> to vector<1x8x128xf32>
    tpu.vector_store %arg6[%206, %c0_61, %c256_62], %209 {strides = array<i32>} : memref<8x8x384xf32, #tpu.memory_space<vmem>>, vector<1x8x128xf32>,
    %c7_i32_63 = arith.constant 7 : i32
    %210 = arith.cmpi eq, %c4_i32, %c7_i32_63 : i32
    %211 = arith.select %210, %192, %170 : vector<8x128xf32>
    %c5_i32 = arith.constant 5 : i32
    %212 = arith.index_cast %c5_i32 : i32 to index
    %c0_64 = arith.constant 0 : index
    %c0_65 = arith.constant 0 : index
    %213 = vector.load %arg2[%212, %c0_64, %c0_65] : memref<8x8x512xbf16, #tpu.memory_space<vmem>>, vector<1x8x512xbf16>
    %214 = vector.shape_cast %213 : vector<1x8x512xbf16> to vector<8x512xbf16>
    %215 = arith.extf %214 : vector<8x512xbf16> to vector<8x512xf32>
    %cst_66 = arith.constant dense<0.000000e+00> : vector<8x512xf32>
    %216 = tpu.matmul %197, %3, %cst_66 {dimension_numbers = #tpu.dot_dimension_numbers<[1], [0], [0], [1], [0, 0, 1, 1], [], []>} : vector<8x128xf32>, vector<128x512xf32>, vector<8x512xf32> -> vector<8x512xf32>
    %217 = arith.addf %215, %216 : vector<8x512xf32>
    %218 = vector.extract_strided_slice %217 {offsets = [0, 0], sizes = [8, 256], strides = [1, 1]} : vector<8x512xf32> to vector<8x256xf32>
    %219 = arith.negf %218 : vector<8x256xf32>
    %220 = math.exp %219 : vector<8x256xf32>
    %cst_67 = arith.constant 1.000000e+00 : f32
    %221 = vector.broadcast %cst_67 : f32 to vector<8x256xf32>
    %222 = arith.addf %221, %220 : vector<8x256xf32>
    %223 = arith.divf %221, %222 : vector<8x256xf32>
    %224 = vector.extract_strided_slice %223 {offsets = [0, 0], sizes = [8, 128], strides = [1, 1]} : vector<8x256xf32> to vector<8x128xf32>
    %225 = vector.extract_strided_slice %223 {offsets = [0, 128], sizes = [8, 128], strides = [1, 1]} : vector<8x256xf32> to vector<8x128xf32>
    %226 = vector.extract_strided_slice %217 {offsets = [0, 256], sizes = [8, 128], strides = [1, 1]} : vector<8x512xf32> to vector<8x128xf32>
    %227 = math.tanh %226 : vector<8x128xf32>
    %228 = vector.extract_strided_slice %217 {offsets = [0, 384], sizes = [8, 128], strides = [1, 1]} : vector<8x512xf32> to vector<8x128xf32>
    %229 = arith.negf %228 : vector<8x128xf32>
    %230 = math.exp %229 : vector<8x128xf32>
    %cst_68 = arith.constant 1.000000e+00 : f32
    %231 = vector.broadcast %cst_68 : f32 to vector<8x128xf32>
    %232 = arith.addf %231, %230 : vector<8x128xf32>
    %233 = arith.divf %231, %232 : vector<8x128xf32>
    %234 = arith.mulf %225, %195 : vector<8x128xf32>
    %235 = arith.mulf %224, %227 : vector<8x128xf32>
    %236 = arith.addf %234, %235 : vector<8x128xf32>
    %237 = math.tanh %236 : vector<8x128xf32>
    %238 = arith.mulf %233, %237 : vector<8x128xf32>
    %239 = arith.index_cast %c5_i32 : i32 to index
    %c0_69 = arith.constant 0 : index
    %c0_70 = arith.constant 0 : index
    %240 = vector.load %arg6[%239, %c0_69, %c0_70] : memref<8x8x384xf32, #tpu.memory_space<vmem>>, vector<1x8x128xf32>
    %241 = vector.shape_cast %240 : vector<1x8x128xf32> to vector<8x128xf32>
    %242 = vector.shape_cast %225 : vector<8x128xf32> to vector<1x8x128xf32>
    tpu.vector_store %arg6[%239, %c0_69, %c0_70], %242 {strides = array<i32>} : memref<8x8x384xf32, #tpu.memory_space<vmem>>, vector<1x8x128xf32>,
    %243 = arith.index_cast %c5_i32 : i32 to index
    %c0_71 = arith.constant 0 : index
    %c128_72 = arith.constant 128 : index
    %244 = vector.load %arg6[%243, %c0_71, %c128_72] : memref<8x8x384xf32, #tpu.memory_space<vmem>>, vector<1x8x128xf32>
    %245 = vector.shape_cast %244 : vector<1x8x128xf32> to vector<8x128xf32>
    %246 = vector.shape_cast %238 : vector<8x128xf32> to vector<1x8x128xf32>
    tpu.vector_store %arg6[%243, %c0_71, %c128_72], %246 {strides = array<i32>} : memref<8x8x384xf32, #tpu.memory_space<vmem>>, vector<1x8x128xf32>,
    %247 = arith.index_cast %c5_i32 : i32 to index
    %c0_73 = arith.constant 0 : index
    %c256_74 = arith.constant 256 : index
    %248 = vector.load %arg6[%247, %c0_73, %c256_74] : memref<8x8x384xf32, #tpu.memory_space<vmem>>, vector<1x8x128xf32>
    %249 = vector.shape_cast %248 : vector<1x8x128xf32> to vector<8x128xf32>
    %250 = vector.shape_cast %227 : vector<8x128xf32> to vector<1x8x128xf32>
    tpu.vector_store %arg6[%247, %c0_73, %c256_74], %250 {strides = array<i32>} : memref<8x8x384xf32, #tpu.memory_space<vmem>>, vector<1x8x128xf32>,
    %c7_i32_75 = arith.constant 7 : i32
    %251 = arith.cmpi eq, %c5_i32, %c7_i32_75 : i32
    %252 = arith.select %251, %233, %211 : vector<8x128xf32>
    %c6_i32 = arith.constant 6 : i32
    %253 = arith.index_cast %c6_i32 : i32 to index
    %c0_76 = arith.constant 0 : index
    %c0_77 = arith.constant 0 : index
    %254 = vector.load %arg2[%253, %c0_76, %c0_77] : memref<8x8x512xbf16, #tpu.memory_space<vmem>>, vector<1x8x512xbf16>
    %255 = vector.shape_cast %254 : vector<1x8x512xbf16> to vector<8x512xbf16>
    %256 = arith.extf %255 : vector<8x512xbf16> to vector<8x512xf32>
    %cst_78 = arith.constant dense<0.000000e+00> : vector<8x512xf32>
    %257 = tpu.matmul %238, %3, %cst_78 {dimension_numbers = #tpu.dot_dimension_numbers<[1], [0], [0], [1], [0, 0, 1, 1], [], []>} : vector<8x128xf32>, vector<128x512xf32>, vector<8x512xf32> -> vector<8x512xf32>
    %258 = arith.addf %256, %257 : vector<8x512xf32>
    %259 = vector.extract_strided_slice %258 {offsets = [0, 0], sizes = [8, 256], strides = [1, 1]} : vector<8x512xf32> to vector<8x256xf32>
    %260 = arith.negf %259 : vector<8x256xf32>
    %261 = math.exp %260 : vector<8x256xf32>
    %cst_79 = arith.constant 1.000000e+00 : f32
    %262 = vector.broadcast %cst_79 : f32 to vector<8x256xf32>
    %263 = arith.addf %262, %261 : vector<8x256xf32>
    %264 = arith.divf %262, %263 : vector<8x256xf32>
    %265 = vector.extract_strided_slice %264 {offsets = [0, 0], sizes = [8, 128], strides = [1, 1]} : vector<8x256xf32> to vector<8x128xf32>
    %266 = vector.extract_strided_slice %264 {offsets = [0, 128], sizes = [8, 128], strides = [1, 1]} : vector<8x256xf32> to vector<8x128xf32>
    %267 = vector.extract_strided_slice %258 {offsets = [0, 256], sizes = [8, 128], strides = [1, 1]} : vector<8x512xf32> to vector<8x128xf32>
    %268 = math.tanh %267 : vector<8x128xf32>
    %269 = vector.extract_strided_slice %258 {offsets = [0, 384], sizes = [8, 128], strides = [1, 1]} : vector<8x512xf32> to vector<8x128xf32>
    %270 = arith.negf %269 : vector<8x128xf32>
    %271 = math.exp %270 : vector<8x128xf32>
    %cst_80 = arith.constant 1.000000e+00 : f32
    %272 = vector.broadcast %cst_80 : f32 to vector<8x128xf32>
    %273 = arith.addf %272, %271 : vector<8x128xf32>
    %274 = arith.divf %272, %273 : vector<8x128xf32>
    %275 = arith.mulf %266, %236 : vector<8x128xf32>
    %276 = arith.mulf %265, %268 : vector<8x128xf32>
    %277 = arith.addf %275, %276 : vector<8x128xf32>
    %278 = math.tanh %277 : vector<8x128xf32>
    %279 = arith.mulf %274, %278 : vector<8x128xf32>
    %280 = arith.index_cast %c6_i32 : i32 to index
    %c0_81 = arith.constant 0 : index
    %c0_82 = arith.constant 0 : index
    %281 = vector.load %arg6[%280, %c0_81, %c0_82] : memref<8x8x384xf32, #tpu.memory_space<vmem>>, vector<1x8x128xf32>
    %282 = vector.shape_cast %281 : vector<1x8x128xf32> to vector<8x128xf32>
    %283 = vector.shape_cast %266 : vector<8x128xf32> to vector<1x8x128xf32>
    tpu.vector_store %arg6[%280, %c0_81, %c0_82], %283 {strides = array<i32>} : memref<8x8x384xf32, #tpu.memory_space<vmem>>, vector<1x8x128xf32>,
    %284 = arith.index_cast %c6_i32 : i32 to index
    %c0_83 = arith.constant 0 : index
    %c128_84 = arith.constant 128 : index
    %285 = vector.load %arg6[%284, %c0_83, %c128_84] : memref<8x8x384xf32, #tpu.memory_space<vmem>>, vector<1x8x128xf32>
    %286 = vector.shape_cast %285 : vector<1x8x128xf32> to vector<8x128xf32>
    %287 = vector.shape_cast %279 : vector<8x128xf32> to vector<1x8x128xf32>
    tpu.vector_store %arg6[%284, %c0_83, %c128_84], %287 {strides = array<i32>} : memref<8x8x384xf32, #tpu.memory_space<vmem>>, vector<1x8x128xf32>,
    %288 = arith.index_cast %c6_i32 : i32 to index
    %c0_85 = arith.constant 0 : index
    %c256_86 = arith.constant 256 : index
    %289 = vector.load %arg6[%288, %c0_85, %c256_86] : memref<8x8x384xf32, #tpu.memory_space<vmem>>, vector<1x8x128xf32>
    %290 = vector.shape_cast %289 : vector<1x8x128xf32> to vector<8x128xf32>
    %291 = vector.shape_cast %268 : vector<8x128xf32> to vector<1x8x128xf32>
    tpu.vector_store %arg6[%288, %c0_85, %c256_86], %291 {strides = array<i32>} : memref<8x8x384xf32, #tpu.memory_space<vmem>>, vector<1x8x128xf32>,
    %c7_i32_87 = arith.constant 7 : i32
    %292 = arith.cmpi eq, %c6_i32, %c7_i32_87 : i32
    %293 = arith.select %292, %274, %252 : vector<8x128xf32>
    %c7_i32_88 = arith.constant 7 : i32
    %294 = arith.index_cast %c7_i32_88 : i32 to index
    %c0_89 = arith.constant 0 : index
    %c0_90 = arith.constant 0 : index
    %295 = vector.load %arg2[%294, %c0_89, %c0_90] : memref<8x8x512xbf16, #tpu.memory_space<vmem>>, vector<1x8x512xbf16>
    %296 = vector.shape_cast %295 : vector<1x8x512xbf16> to vector<8x512xbf16>
    %297 = arith.extf %296 : vector<8x512xbf16> to vector<8x512xf32>
    %cst_91 = arith.constant dense<0.000000e+00> : vector<8x512xf32>
    %298 = tpu.matmul %279, %3, %cst_91 {dimension_numbers = #tpu.dot_dimension_numbers<[1], [0], [0], [1], [0, 0, 1, 1], [], []>} : vector<8x128xf32>, vector<128x512xf32>, vector<8x512xf32> -> vector<8x512xf32>
    %299 = arith.addf %297, %298 : vector<8x512xf32>
    %300 = vector.extract_strided_slice %299 {offsets = [0, 0], sizes = [8, 256], strides = [1, 1]} : vector<8x512xf32> to vector<8x256xf32>
    %301 = arith.negf %300 : vector<8x256xf32>
    %302 = math.exp %301 : vector<8x256xf32>
    %cst_92 = arith.constant 1.000000e+00 : f32
    %303 = vector.broadcast %cst_92 : f32 to vector<8x256xf32>
    %304 = arith.addf %303, %302 : vector<8x256xf32>
    %305 = arith.divf %303, %304 : vector<8x256xf32>
    %306 = vector.extract_strided_slice %305 {offsets = [0, 0], sizes = [8, 128], strides = [1, 1]} : vector<8x256xf32> to vector<8x128xf32>
    %307 = vector.extract_strided_slice %305 {offsets = [0, 128], sizes = [8, 128], strides = [1, 1]} : vector<8x256xf32> to vector<8x128xf32>
    %308 = vector.extract_strided_slice %299 {offsets = [0, 256], sizes = [8, 128], strides = [1, 1]} : vector<8x512xf32> to vector<8x128xf32>
    %309 = math.tanh %308 : vector<8x128xf32>
    %310 = vector.extract_strided_slice %299 {offsets = [0, 384], sizes = [8, 128], strides = [1, 1]} : vector<8x512xf32> to vector<8x128xf32>
    %311 = arith.negf %310 : vector<8x128xf32>
    %312 = math.exp %311 : vector<8x128xf32>
    %cst_93 = arith.constant 1.000000e+00 : f32
    %313 = vector.broadcast %cst_93 : f32 to vector<8x128xf32>
    %314 = arith.addf %313, %312 : vector<8x128xf32>
    %315 = arith.divf %313, %314 : vector<8x128xf32>
    %316 = arith.mulf %307, %277 : vector<8x128xf32>
    %317 = arith.mulf %306, %309 : vector<8x128xf32>
    %318 = arith.addf %316, %317 : vector<8x128xf32>
    %319 = math.tanh %318 : vector<8x128xf32>
    %320 = arith.mulf %315, %319 : vector<8x128xf32>
    %321 = arith.index_cast %c7_i32_88 : i32 to index
    %c0_94 = arith.constant 0 : index
    %c0_95 = arith.constant 0 : index
    %322 = vector.load %arg6[%321, %c0_94, %c0_95] : memref<8x8x384xf32, #tpu.memory_space<vmem>>, vector<1x8x128xf32>
    %323 = vector.shape_cast %322 : vector<1x8x128xf32> to vector<8x128xf32>
    %324 = vector.shape_cast %307 : vector<8x128xf32> to vector<1x8x128xf32>
    tpu.vector_store %arg6[%321, %c0_94, %c0_95], %324 {strides = array<i32>} : memref<8x8x384xf32, #tpu.memory_space<vmem>>, vector<1x8x128xf32>,
    %325 = arith.index_cast %c7_i32_88 : i32 to index
    %c0_96 = arith.constant 0 : index
    %c128_97 = arith.constant 128 : index
    %326 = vector.load %arg6[%325, %c0_96, %c128_97] : memref<8x8x384xf32, #tpu.memory_space<vmem>>, vector<1x8x128xf32>
    %327 = vector.shape_cast %326 : vector<1x8x128xf32> to vector<8x128xf32>
    %328 = vector.shape_cast %320 : vector<8x128xf32> to vector<1x8x128xf32>
    tpu.vector_store %arg6[%325, %c0_96, %c128_97], %328 {strides = array<i32>} : memref<8x8x384xf32, #tpu.memory_space<vmem>>, vector<1x8x128xf32>,
    %329 = arith.index_cast %c7_i32_88 : i32 to index
    %c0_98 = arith.constant 0 : index
    %c256_99 = arith.constant 256 : index
    %330 = vector.load %arg6[%329, %c0_98, %c256_99] : memref<8x8x384xf32, #tpu.memory_space<vmem>>, vector<1x8x128xf32>
    %331 = vector.shape_cast %330 : vector<1x8x128xf32> to vector<8x128xf32>
    %332 = vector.shape_cast %309 : vector<8x128xf32> to vector<1x8x128xf32>
    tpu.vector_store %arg6[%329, %c0_98, %c256_99], %332 {strides = array<i32>} : memref<8x8x384xf32, #tpu.memory_space<vmem>>, vector<1x8x128xf32>,
    %c7_i32_100 = arith.constant 7 : i32
    %333 = arith.cmpi eq, %c7_i32_88, %c7_i32_100 : i32
    %334 = arith.select %333, %315, %293 : vector<8x128xf32>
    %c8_i32 = arith.constant 8 : i32
    %c0_101 = arith.constant 0 : index
    %c0_102 = arith.constant 0 : index
    %335 = vector.load %arg8[%c0_101, %c0_102] : memref<8x128xf32, #tpu.memory_space<vmem>>, vector<8x128xf32>
    tpu.vector_store %arg8[%c0_101, %c0_102], %320 {strides = array<i32>} : memref<8x128xf32, #tpu.memory_space<vmem>>, vector<8x128xf32>,
    %c0_103 = arith.constant 0 : index
    %c0_104 = arith.constant 0 : index
    %336 = vector.load %arg9[%c0_103, %c0_104] : memref<8x128xf32, #tpu.memory_space<vmem>>, vector<8x128xf32>
    tpu.vector_store %arg9[%c0_103, %c0_104], %318 {strides = array<i32>} : memref<8x128xf32, #tpu.memory_space<vmem>>, vector<8x128xf32>,
    %c0_i32_105 = arith.constant 0 : i32
    %337 = arith.cmpi eq, %arg1, %c0_i32_105 : i32
    %338 = arith.extui %337 : i1 to i32
    %c0_i32_106 = arith.constant 0 : i32
    %339 = arith.cmpi ne, %338, %c0_i32_106 : i32
    scf.if %339 {
      %c0_107 = arith.constant 0 : index
      %c0_108 = arith.constant 0 : index
      %340 = vector.load %arg7[%c0_107, %c0_108] : memref<8x128xf32, #tpu.memory_space<vmem>>, vector<8x128xf32>
      tpu.vector_store %arg7[%c0_107, %c0_108], %334 {strides = array<i32>} : memref<8x128xf32, #tpu.memory_space<vmem>>, vector<8x128xf32>,
    } else {
    }
    return
  }
  func.func @transform_0(%arg0: i32, %arg1: i32) -> (i32, i32, i32) {
    %c0_i32 = arith.constant 0 : i32
    %c0_i32_0 = arith.constant 0 : i32
    return %arg1, %arg0, %c0_i32 : i32, i32, i32
  }
  func.func @transform_1(%arg0: i32, %arg1: i32) -> (i32, i32) {
    %c0_i32 = arith.constant 0 : i32
    %c0_i32_0 = arith.constant 0 : i32
    %c0_i32_1 = arith.constant 0 : i32
    return %c0_i32, %c0_i32_0 : i32, i32
  }
  func.func @transform_2(%arg0: i32, %arg1: i32) -> (i32, i32) {
    %c0_i32 = arith.constant 0 : i32
    %c0_i32_0 = arith.constant 0 : i32
    return %arg0, %c0_i32 : i32, i32
  }
  func.func @transform_3(%arg0: i32, %arg1: i32) -> (i32, i32) {
    %c0_i32 = arith.constant 0 : i32
    %c0_i32_0 = arith.constant 0 : i32
    return %arg0, %c0_i32 : i32, i32
  }
  func.func @transform_4(%arg0: i32, %arg1: i32) -> (i32, i32, i32) {
    %c0_i32 = arith.constant 0 : i32
    %c0_i32_0 = arith.constant 0 : i32
    return %arg1, %arg0, %c0_i32 : i32, i32, i32
  }
  func.func @transform_5(%arg0: i32, %arg1: i32) -> (i32, i32) {
    %c0_i32 = arith.constant 0 : i32
    %c0_i32_0 = arith.constant 0 : i32
    return %arg0, %c0_i32 : i32, i32
  }
}

</mosaic_0001>

<llo_original>
// kernel: tpu_custom_call.1
$region0: #{tpu_custom_call.1}
  #allocation0 [shape = 'u32[]', space=smem, size = 0x4, offset = 0x4, fixed_abs, tag = 'smem constant byte address 0x4 - core index']
  #allocation1 [shape = 'u32[144,128]{1,0:T(1,128)}', space=vmem, size = 0x12000, scoped, tag = 'internal scratch']
  #allocation2 [shape = 'f32[8,128]{1,0:T(8,128)}', space=vmem, size = 0x1000, scoped, tag = 'scratch operand']
  #allocation3 [shape = 'f32[8,128]{1,0:T(8,128)}', space=vmem, size = 0x1000, scoped, tag = 'scratch operand']
  %s0 = inlined_call_operand.hbm [shape: bf16[8,8,512], index: 0, kind: input, shape index: {}]
  %s1 = inlined_call_operand.hbm [shape: f32[128,512], index: 1, kind: input, shape index: {}]
  %s2 = inlined_call_operand.hbm [shape: f32[8,128], index: 2, kind: input, shape index: {}]
  %s3 = inlined_call_operand.hbm [shape: f32[8,128], index: 3, kind: input, shape index: {}]
  %s4 = inlined_call_operand.hbm [shape: f32[8,8,384], index: 4, kind: output, shape index: {0}]
  %s5 = inlined_call_operand.hbm [shape: f32[8,128], index: 5, kind: output, shape index: {1}]
  %6 = xla_tuple %s4, %s5
  %s7 = sld [smem:[#allocation0]]
  $region58: #{tpu_custom_call.1} parent=0
    _
  %s9 = ssub.s32 1, %s7
  %s10 = scalar_select 0, %s9, %s7
  $region1: #{tpu_custom_call.1} parent=0
    #allocation4 [shape = 'u8[65536]{0}', space=vmem, size = 0x10000, scoped, tag = 'input window, operand 0, single buffered']
    #allocation5 [shape = 's32[1]{0}', space=sflag, size = 0x4, scoped, tag = 'scoped memory for tpu_custom_call.1']
    #allocation6 [shape = 's32[1]{0}', space=sflag, size = 0x4, scoped, tag = 'scoped memory for tpu_custom_call.1']
    #allocation7 [shape = 'u8[262144]{0}', space=vmem, size = 0x40000, scoped, tag = 'input window, operand 1, single buffered']
    #allocation8 [shape = 's32[1]{0}', space=sflag, size = 0x4, scoped, tag = 'scoped memory for tpu_custom_call.1']
    #allocation9 [shape = 'u8[4096]{0}', space=vmem, size = 0x1000, scoped, tag = 'input window, operand 2, single buffered']
    #allocation10 [shape = 'u8[4096]{0}', space=vmem, size = 0x1000, scoped, tag = 'input window, operand 3, single buffered']
    #allocation11 [shape = 's32[1]{0}', space=sflag, size = 0x4, scoped, tag = 'scoped memory for tpu_custom_call.1']
    #allocation12 [shape = 'u8[98304]{0}', space=vmem, size = 0x18000, scoped, tag = 'output window, operand 0, single buffered']
    #allocation13 [shape = 'u8[4096]{0}', space=vmem, size = 0x1000, scoped, tag = 'output window, operand 1, single buffered']
    #allocation14 [shape = 's32[1]{0}', space=sflag, size = 0x4, scoped, tag = 'scoped memory for tpu_custom_call.1']
    %11 = vsyncpa [#allocation5], 0
    %12 = vsyncpa [#allocation8], 0
    %13 = vsyncpa [#allocation11], 0
    %14 = vsyncpa [#allocation6], 0
    %15 = vsyncpa [#allocation14], 0
    // Predicated region
    $region2: #{tpu_custom_call.1} parent=1 // pred_check
      _
    $region3: #{tpu_custom_call.1} parent=1 // pred_check_branch
      %17 = sbr.rel (0) target = $region5
    $region4: #{tpu_custom_call.1} parent=1 // pred_region
      %s19 = ssub.s32 2048, 2048
      %20 = vsyncadd [#allocation5], %s19
      %s21 = sshll.u32 [#allocation4], 4
      %s22 = int_to_ptr.vmem [resolvable:$true] %s21
      %27 = dma.hbm_to_vmem [thread:$0]  %s0, 2048, %s22, [#allocation5], 256, 256, 16
    $region5: #{tpu_custom_call.1} parent=1 // pred_fallthru
      _
    // Predicated region
    $region6: #{tpu_custom_call.1} parent=1 // pred_check
      _
    $region7: #{tpu_custom_call.1} parent=1 // pred_check_branch
      %29 = sbr.rel (0) target = $region9
    $region8: #{tpu_custom_call.1} parent=1 // pred_region
      %s31 = ssub.s32 8192, 8192
      %32 = vsyncadd [#allocation8], %s31
      %s33 = sshll.u32 [#allocation7], 4
      %s34 = int_to_ptr.vmem [resolvable:$true] %s33
      %39 = dma.hbm_to_vmem [thread:$0]  %s1, 8192, %s34, [#allocation8], 512, 512, 32
    $region9: #{tpu_custom_call.1} parent=1 // pred_fallthru
      _
    // Predicated region
    $region10: #{tpu_custom_call.1} parent=1 // pred_check
      _
    $region11: #{tpu_custom_call.1} parent=1 // pred_check_branch
      %41 = sbr.rel (0) target = $region13
    $region12: #{tpu_custom_call.1} parent=1 // pred_region
      %s43 = ssub.s32 128, 128
      %44 = vsyncadd [#allocation8], %s43
      %s46 = sshll.u32 [#allocation9], 4
      %s47 = int_to_ptr.vmem [resolvable:$true] %s46
      %49 = dma.hbm_to_vmem [thread:$0]  %s2, 128, %s47, [#allocation8]
    $region13: #{tpu_custom_call.1} parent=1 // pred_fallthru
      _
    // Predicated region
    $region14: #{tpu_custom_call.1} parent=1 // pred_check
      _
    $region15: #{tpu_custom_call.1} parent=1 // pred_check_branch
      %51 = sbr.rel (0) target = $region17
    $region16: #{tpu_custom_call.1} parent=1 // pred_region
      %s53 = ssub.s32 128, 128
      %54 = vsyncadd [#allocation11], %s53
      %s56 = sshll.u32 [#allocation10], 4
      %s57 = int_to_ptr.vmem [resolvable:$true] %s56
      %59 = dma.hbm_to_vmem [thread:$0]  %s3, 128, %s57, [#allocation11]
    $region17: #{tpu_custom_call.1} parent=1 // pred_fallthru
      _
    // Predicated region
    $region18: #{tpu_custom_call.1} parent=1 // pred_check
      _
    $region19: #{tpu_custom_call.1} parent=1 // pred_check_branch
      %61 = sbr.rel (0) target = $region21
    $region20: #{tpu_custom_call.1} parent=1 // pred_region
      %62 = dma.done [#allocation5], 2048
    $region21: #{tpu_custom_call.1} parent=1 // pred_fallthru
      _
    // Predicated region
    $region22: #{tpu_custom_call.1} parent=1 // pred_check
      _
    $region23: #{tpu_custom_call.1} parent=1 // pred_check_branch
      %64 = sbr.rel (0) target = $region25
    $region24: #{tpu_custom_call.1} parent=1 // pred_region
      %65 = dma.done [#allocation8], 8192
    $region25: #{tpu_custom_call.1} parent=1 // pred_fallthru
      _
    // Predicated region
    $region26: #{tpu_custom_call.1} parent=1 // pred_check
      _
    $region27: #{tpu_custom_call.1} parent=1 // pred_check_branch
      %67 = sbr.rel (0) target = $region29
    $region28: #{tpu_custom_call.1} parent=1 // pred_region
      %68 = dma.done [#allocation8], 128
    $region29: #{tpu_custom_call.1} parent=1 // pred_fallthru
      _
    // Predicated region
    $region30: #{tpu_custom_call.1} parent=1 // pred_check
      _
    $region31: #{tpu_custom_call.1} parent=1 // pred_check_branch
      %70 = sbr.rel (0) target = $region33
    $region32: #{tpu_custom_call.1} parent=1 // pred_region
      %71 = dma.done [#allocation11], 128
    $region33: #{tpu_custom_call.1} parent=1 // pred_fallthru
      _
    %p72 = scmp.eq.s32.totalorder 0, 0
    // Predicated region
    $region34: #{tpu_custom_call.1} parent=1 // pred_check
      %p73 = pneg %p72
    $region35: #{tpu_custom_call.1} parent=1 // pred_check_branch
      %75 = sbr.rel (%p73) target = $region37
    $region36: #{tpu_custom_call.1} parent=1 // pred_region
      %v76 = vld [vmem:[#allocation9] sm:$0xff]
      %77 = vst [vmem:[#allocation2] sm:$0xff] %v76
      %v78 = vld [vmem:[#allocation10] sm:$0xff]
      %79 = vst [vmem:[#allocation3] sm:$0xff] %v78
    $region37: #{tpu_custom_call.1} parent=1 // pred_fallthru
      _
    %v80 = vld [vmem:[#allocation7] sm:$0xff]
    %v81 = vld [vmem:[#allocation7 + $0x8] sm:$0xff]
    %v82 = vld [vmem:[#allocation7 + $0x10] sm:$0xff]
    %v83 = vld [vmem:[#allocation7 + $0x18] sm:$0xff]
    %v84 = vld [vmem:[#allocation7 + $0x20] sm:$0xff]
    %v85 = vld [vmem:[#allocation7 + $0x28] sm:$0xff]
    %v86 = vld [vmem:[#allocation7 + $0x30] sm:$0xff]
    %v87 = vld [vmem:[#allocation7 + $0x38] sm:$0xff]
    %v88 = vld [vmem:[#allocation7 + $0x40] sm:$0xff]
    %v89 = vld [vmem:[#allocation7 + $0x48] sm:$0xff]
    %v90 = vld [vmem:[#allocation7 + $0x50] sm:$0xff]
    %v91 = vld [vmem:[#allocation7 + $0x58] sm:$0xff]
    %v92 = vld [vmem:[#allocation7 + $0x60] sm:$0xff]
    %v93 = vld [vmem:[#allocation7 + $0x68] sm:$0xff]
    %v94 = vld [vmem:[#allocation7 + $0x70] sm:$0xff]
    %v95 = vld [vmem:[#allocation7 + $0x78] sm:$0xff]
    %v96 = vld [vmem:[#allocation7 + $0x80] sm:$0xff]
    %v97 = vld [vmem:[#allocation7 + $0x88] sm:$0xff]
    %v98 = vld [vmem:[#allocation7 + $0x90] sm:$0xff]
    %v99 = vld [vmem:[#allocation7 + $0x98] sm:$0xff]
    %v100 = vld [vmem:[#allocation7 + $0xa0] sm:$0xff]
    %v101 = vld [vmem:[#allocation7 + $0xa8] sm:$0xff]
    %v102 = vld [vmem:[#allocation7 + $0xb0] sm:$0xff]
    %v103 = vld [vmem:[#allocation7 + $0xb8] sm:$0xff]
    %v104 = vld [vmem:[#allocation7 + $0xc0] sm:$0xff]
    %v105 = vld [vmem:[#allocation7 + $0xc8] sm:$0xff]
    %v106 = vld [vmem:[#allocation7 + $0xd0] sm:$0xff]
    %v107 = vld [vmem:[#allocation7 + $0xd8] sm:$0xff]
    %v108 = vld [vmem:[#allocation7 + $0xe0] sm:$0xff]
    %v109 = vld [vmem:[#allocation7 + $0xe8] sm:$0xff]
    %v110 = vld [vmem:[#allocation7 + $0xf0] sm:$0xff]
    %v111 = vld [vmem:[#allocation7 + $0xf8] sm:$0xff]
    %v112 = vld [vmem:[#allocation7 + $0x100] sm:$0xff]
    %v113 = vld [vmem:[#allocation7 + $0x108] sm:$0xff]
    %v114 = vld [vmem:[#allocation7 + $0x110] sm:$0xff]
    %v115 = vld [vmem:[#allocation7 + $0x118] sm:$0xff]
    %v116 = vld [vmem:[#allocation7 + $0x120] sm:$0xff]
    %v117 = vld [vmem:[#allocation7 + $0x128] sm:$0xff]
    %v118 = vld [vmem:[#allocation7 + $0x130] sm:$0xff]
    %v119 = vld [vmem:[#allocation7 + $0x138] sm:$0xff]
    %v120 = vld [vmem:[#allocation7 + $0x140] sm:$0xff]
    %v121 = vld [vmem:[#allocation7 + $0x148] sm:$0xff]
    %v122 = vld [vmem:[#allocation7 + $0x150] sm:$0xff]
    %v123 = vld [vmem:[#allocation7 + $0x158] sm:$0xff]
    %v124 = vld [vmem:[#allocation7 + $0x160] sm:$0xff]
    %v125 = vld [vmem:[#allocation7 + $0x168] sm:$0xff]
    %v126 = vld [vmem:[#allocation7 + $0x170] sm:$0xff]
    %v127 = vld [vmem:[#allocation7 + $0x178] sm:$0xff]
    %v128 = vld [vmem:[#allocation7 + $0x180] sm:$0xff]
    %v129 = vld [vmem:[#allocation7 + $0x188] sm:$0xff]
    %v130 = vld [vmem:[#allocation7 + $0x190] sm:$0xff]
    %v131 = vld [vmem:[#allocation7 + $0x198] sm:$0xff]
    %v132 = vld [vmem:[#allocation7 + $0x1a0] sm:$0xff]
    %v133 = vld [vmem:[#allocation7 + $0x1a8] sm:$0xff]
    %v134 = vld [vmem:[#allocation7 + $0x1b0] sm:$0xff]
    %v135 = vld [vmem:[#allocation7 + $0x1b8] sm:$0xff]
    %v136 = vld [vmem:[#allocation7 + $0x1c0] sm:$0xff]
    %v137 = vld [vmem:[#allocation7 + $0x1c8] sm:$0xff]
    %v138 = vld [vmem:[#allocation7 + $0x1d0] sm:$0xff]
    %v139 = vld [vmem:[#allocation7 + $0x1d8] sm:$0xff]
    %v140 = vld [vmem:[#allocation7 + $0x1e0] sm:$0xff]
    %v141 = vld [vmem:[#allocation7 + $0x1e8] sm:$0xff]
    %v142 = vld [vmem:[#allocation7 + $0x1f0] sm:$0xff]
    %v143 = vld [vmem:[#allocation7 + $0x1f8] sm:$0xff]
    %v144 = vld [vmem:[#allocation2] sm:$0xff]
    %v145 = vld [vmem:[#allocation3] sm:$0xff]
    %v146 = vld [vmem:[#allocation4] sm:$0xff]
    %v147 = vld [vmem:[#allocation4 + $0x8] sm:$0xff]
    %v148 = vunpack.c.l.bf16 %v146
    %v149 = vunpack.c.h.bf16 %v146
    %v150 = vunpack.c.l.bf16 %v147
    %v151 = vunpack.c.h.bf16 %v147
    %152 = vmatprep.subr.mxu0 %v141
    %153 = vmatpush1.msra.mxu0 %v140
    %154 = vmatprep.subr.mxu0 %v137
    %155 = vmatpush1.msra.mxu0 %v136
    %156 = vmatprep.subr.mxu0 %v133
    %157 = vmatpush1.msra.mxu0 %v132
    %158 = vmatprep.subr.mxu0 %v129
    %159 = vmatpush1.msra.mxu0 %v128
    %160 = vmatprep.subr.mxu0 %v125
    %161 = vmatpush1.msra.mxu0 %v124
    %162 = vmatprep.subr.mxu0 %v121
    %163 = vmatpush1.msra.mxu0 %v120
    %164 = vmatprep.subr.mxu0 %v117
    %165 = vmatpush1.msra.mxu0 %v116
    %166 = vmatprep.subr.mxu0 %v113
    %167 = vmatpush1.msra.mxu0 %v112
    %168 = vmatprep.subr.mxu0 %v109
    %169 = vmatpush1.msra.mxu0 %v108
    %170 = vmatprep.subr.mxu0 %v105
    %171 = vmatpush1.msra.mxu0 %v104
    %172 = vmatprep.subr.mxu0 %v101
    %173 = vmatpush1.msra.mxu0 %v100
    %174 = vmatprep.subr.mxu0 %v97
    %175 = vmatpush1.msra.mxu0 %v96
    %176 = vmatprep.subr.mxu0 %v93
    %177 = vmatpush1.msra.mxu0 %v92
    %178 = vmatprep.subr.mxu0 %v89
    %179 = vmatpush1.msra.mxu0 %v88
    %180 = vmatprep.subr.mxu0 %v85
    %181 = vmatpush1.msra.mxu0 %v84
    %182 = vmatprep.subr.mxu0 %v81
    %183 = vmatpush1.msra.mxu0 %v80
    %184 = vmatprep.subr.mxu0 0.0
    %185 = vmatpush2.msra.mxu0 0.0
    %186 = vmatprep.subr.mxu0 0.0
    %187 = vmatpush2.msra.mxu0 0.0
    %188 = vmatprep.subr.mxu0 0.0
    %189 = vmatpush2.msra.mxu0 0.0
    %190 = vmatprep.subr.mxu0 0.0
    %191 = vmatpush2.msra.mxu0 0.0
    %192 = vmatprep.subr.mxu0 0.0
    %193 = vmatpush2.msra.mxu0 0.0
    %194 = vmatprep.subr.mxu0 0.0
    %195 = vmatpush2.msra.mxu0 0.0
    %196 = vmatprep.subr.mxu0 0.0
    %197 = vmatpush2.msra.mxu0 0.0
    %198 = vmatprep.subr.mxu0 0.0
    %199 = vmatpush2.msra.mxu0 0.0
    %200 = vmatprep.subr.mxu0 0.0
    %201 = vmatpush2.msra.mxu0 0.0
    %202 = vmatprep.subr.mxu0 0.0
    %203 = vmatpush2.msra.mxu0 0.0
    %204 = vmatprep.subr.mxu0 0.0
    %205 = vmatpush2.msra.mxu0 0.0
    %206 = vmatprep.subr.mxu0 0.0
    %207 = vmatpush2.msra.mxu0 0.0
    %208 = vmatprep.subr.mxu0 0.0
    %209 = vmatpush2.msra.mxu0 0.0
    %210 = vmatprep.subr.mxu0 0.0
    %211 = vmatpush2.msra.mxu0 0.0
    %212 = vmatprep.subr.mxu0 0.0
    %213 = vmatpush2.msra.mxu0 0.0
    %214 = vmatprep.subr.mxu0 0.0
    %215 = vmatpush2.msra.mxu0 0.0
    %216 = vmatprep.mubr.f32.mxu0 0.0
    %217 = vmatmul.mubr.f32.gmra.mxu0 %v144
    %v218 = vpop.f32.mrf.mxu0
    %v219 = vadd.f32 0.0, %v218
    %v220 = vpop.f32.mrf.mxu0
    %v221 = vadd.f32 0.0, %v220
    %222 = vdwg.mxu0
    %223 = vmatprep.subr.mxu0 %v143
    %224 = vmatpush1.msra.mxu0 %v142
    %225 = vmatprep.subr.mxu0 %v139
    %226 = vmatpush1.msra.mxu0 %v138
    %227 = vmatprep.subr.mxu0 %v135
    %228 = vmatpush1.msra.mxu0 %v134
    %229 = vmatprep.subr.mxu0 %v131
    %230 = vmatpush1.msra.mxu0 %v130
    %231 = vmatprep.subr.mxu0 %v127
    %232 = vmatpush1.msra.mxu0 %v126
    %233 = vmatprep.subr.mxu0 %v123
    %234 = vmatpush1.msra.mxu0 %v122
    %235 = vmatprep.subr.mxu0 %v119
    %236 = vmatpush1.msra.mxu0 %v118
    %237 = vmatprep.subr.mxu0 %v115
    %238 = vmatpush1.msra.mxu0 %v114
    %239 = vmatprep.subr.mxu0 %v111
    %240 = vmatpush1.msra.mxu0 %v110
    %241 = vmatprep.subr.mxu0 %v107
    %242 = vmatpush1.msra.mxu0 %v106
    %243 = vmatprep.subr.mxu0 %v103
    %244 = vmatpush1.msra.mxu0 %v102
    %245 = vmatprep.subr.mxu0 %v99
    %246 = vmatpush1.msra.mxu0 %v98
    %247 = vmatprep.subr.mxu0 %v95
    %248 = vmatpush1.msra.mxu0 %v94
    %249 = vmatprep.subr.mxu0 %v91
    %250 = vmatpush1.msra.mxu0 %v90
    %251 = vmatprep.subr.mxu0 %v87
    %252 = vmatpush1.msra.mxu0 %v86
    %253 = vmatprep.subr.mxu0 %v83
    %254 = vmatpush1.msra.mxu0 %v82
    %255 = vmatprep.subr.mxu0 0.0
    %256 = vmatpush2.msra.mxu0 0.0
    %257 = vmatprep.subr.mxu0 0.0
    %258 = vmatpush2.msra.mxu0 0.0
    %259 = vmatprep.subr.mxu0 0.0
    %260 = vmatpush2.msra.mxu0 0.0
    %261 = vmatprep.subr.mxu0 0.0
    %262 = vmatpush2.msra.mxu0 0.0
    %263 = vmatprep.subr.mxu0 0.0
    %264 = vmatpush2.msra.mxu0 0.0
    %265 = vmatprep.subr.mxu0 0.0
    %266 = vmatpush2.msra.mxu0 0.0
    %267 = vmatprep.subr.mxu0 0.0
    %268 = vmatpush2.msra.mxu0 0.0
    %269 = vmatprep.subr.mxu0 0.0
    %270 = vmatpush2.msra.mxu0 0.0
    %271 = vmatprep.subr.mxu0 0.0
    %272 = vmatpush2.msra.mxu0 0.0
    %273 = vmatprep.subr.mxu0 0.0
    %274 = vmatpush2.msra.mxu0 0.0
    %275 = vmatprep.subr.mxu0 0.0
    %276 = vmatpush2.msra.mxu0 0.0
    %277 = vmatprep.subr.mxu0 0.0
    %278 = vmatpush2.msra.mxu0 0.0
    %279 = vmatprep.subr.mxu0 0.0
    %280 = vmatpush2.msra.mxu0 0.0
    %281 = vmatprep.subr.mxu0 0.0
    %282 = vmatpush2.msra.mxu0 0.0
    %283 = vmatprep.subr.mxu0 0.0
    %284 = vmatpush2.msra.mxu0 0.0
    %285 = vmatprep.subr.mxu0 0.0
    %286 = vmatpush2.msra.mxu0 0.0
    %287 = vmatprep.mubr.f32.mxu0 0.0
    %288 = vmatmul.mubr.f32.gmra.mxu0 %v144
    %v289 = vpop.f32.mrf.mxu0
    %v290 = vadd.f32 0.0, %v289
    %v291 = vpop.f32.mrf.mxu0
    %v292 = vadd.f32 0.0, %v291
    %293 = vdwg.mxu0
    %v294 = vadd.f32 %v148, %v219
    %v295 = vadd.f32 %v149, %v221
    %v296 = vadd.f32 %v150, %v290
    %v297 = vadd.f32 %v151, %v292
    %v298 = vxor.u32 %v294, 2147483648
    %v299 = vxor.u32 %v295, 2147483648
    %v300 = vmul.f32 %v298, 1.442695
    %v301 = vpow.pop %v300
    %v302 = vmul.f32 %v299, 1.442695
    %v303 = vpow.pop %v302
    %v304 = vadd.f32 %v301, 1.0
    %v305 = vadd.f32 %v303, 1.0
    %v306 = vrcp.pop %v304
    %v307 = vmul.f32 1.0, %v306
    %v308 = vrcp.pop %v305
    %v309 = vmul.f32 1.0, %v308
    %v310 = vtanh.pop %v296
    %v311 = vxor.u32 %v297, 2147483648
    %v312 = vmul.f32 %v311, 1.442695
    %v313 = vpow.pop %v312
    %v314 = vadd.f32 %v313, 1.0
    %v315 = vrcp.pop %v314
    %v316 = vmul.f32 1.0, %v315
    %v317 = vmul.f32 %v309, %v145
    %v318 = vmul.f32 %v307, %v310
    %v319 = vadd.f32 %v317, %v318
    %v320 = vtanh.pop %v319
    %v321 = vmul.f32 %v316, %v320
    %322 = vst [vmem:[#allocation12] sm:$0xff] %v309
    %323 = vst [vmem:[#allocation12 + $0x8] sm:$0xff] %v321
    %324 = vst [vmem:[#allocation12 + $0x10] sm:$0xff] %v310
    %s325 = scalar_lea.vmem [#allocation4], 16
    %v326 = vld [vmem:[%s325] sm:$0xff]
    %v327 = vld [vmem:[%s325 + $0x8] sm:$0xff]
    %v328 = vunpack.c.l.bf16 %v326
    %v329 = vunpack.c.h.bf16 %v326
    %v330 = vunpack.c.l.bf16 %v327
    %v331 = vunpack.c.h.bf16 %v327
    %332 = vmatprep.subr.mxu0 %v141
    %333 = vmatpush1.msra.mxu0 %v140
    %334 = vmatprep.subr.mxu0 %v137
    %335 = vmatpush1.msra.mxu0 %v136
    %336 = vmatprep.subr.mxu0 %v133
    %337 = vmatpush1.msra.mxu0 %v132
    %338 = vmatprep.subr.mxu0 %v129
    %339 = vmatpush1.msra.mxu0 %v128
    %340 = vmatprep.subr.mxu0 %v125
    %341 = vmatpush1.msra.mxu0 %v124
    %342 = vmatprep.subr.mxu0 %v121
    %343 = vmatpush1.msra.mxu0 %v120
    %344 = vmatprep.subr.mxu0 %v117
    %345 = vmatpush1.msra.mxu0 %v116
    %346 = vmatprep.subr.mxu0 %v113
    %347 = vmatpush1.msra.mxu0 %v112
    %348 = vmatprep.subr.mxu0 %v109
    %349 = vmatpush1.msra.mxu0 %v108
    %350 = vmatprep.subr.mxu0 %v105
    %351 = vmatpush1.msra.mxu0 %v104
    %352 = vmatprep.subr.mxu0 %v101
    %353 = vmatpush1.msra.mxu0 %v100
    %354 = vmatprep.subr.mxu0 %v97
    %355 = vmatpush1.msra.mxu0 %v96
    %356 = vmatprep.subr.mxu0 %v93
    %357 = vmatpush1.msra.mxu0 %v92
    %358 = vmatprep.subr.mxu0 %v89
    %359 = vmatpush1.msra.mxu0 %v88
    %360 = vmatprep.subr.mxu0 %v85
    %361 = vmatpush1.msra.mxu0 %v84
    %362 = vmatprep.subr.mxu0 %v81
    %363 = vmatpush1.msra.mxu0 %v80
    %364 = vmatprep.subr.mxu0 0.0
    %365 = vmatpush2.msra.mxu0 0.0
    %366 = vmatprep.subr.mxu0 0.0
    %367 = vmatpush2.msra.mxu0 0.0
    %368 = vmatprep.subr.mxu0 0.0
    %369 = vmatpush2.msra.mxu0 0.0
    %370 = vmatprep.subr.mxu0 0.0
    %371 = vmatpush2.msra.mxu0 0.0
    %372 = vmatprep.subr.mxu0 0.0
    %373 = vmatpush2.msra.mxu0 0.0
    %374 = vmatprep.subr.mxu0 0.0
    %375 = vmatpush2.msra.mxu0 0.0
    %376 = vmatprep.subr.mxu0 0.0
    %377 = vmatpush2.msra.mxu0 0.0
    %378 = vmatprep.subr.mxu0 0.0
    %379 = vmatpush2.msra.mxu0 0.0
    %380 = vmatprep.subr.mxu0 0.0
    %381 = vmatpush2.msra.mxu0 0.0
    %382 = vmatprep.subr.mxu0 0.0
    %383 = vmatpush2.msra.mxu0 0.0
    %384 = vmatprep.subr.mxu0 0.0
    %385 = vmatpush2.msra.mxu0 0.0
    %386 = vmatprep.subr.mxu0 0.0
    %387 = vmatpush2.msra.mxu0 0.0
    %388 = vmatprep.subr.mxu0 0.0
    %389 = vmatpush2.msra.mxu0 0.0
    %390 = vmatprep.subr.mxu0 0.0
    %391 = vmatpush2.msra.mxu0 0.0
    %392 = vmatprep.subr.mxu0 0.0
    %393 = vmatpush2.msra.mxu0 0.0
    %394 = vmatprep.subr.mxu0 0.0
    %395 = vmatpush2.msra.mxu0 0.0
    %396 = vmatprep.mubr.f32.mxu0 0.0
    %397 = vmatmul.mubr.f32.gmra.mxu0 %v321
    %v398 = vpop.f32.mrf.mxu0
    %v399 = vadd.f32 0.0, %v398
    %v400 = vpop.f32.mrf.mxu0
    %v401 = vadd.f32 0.0, %v400
    %402 = vdwg.mxu0
    %403 = vmatprep.subr.mxu0 %v143
    %404 = vmatpush1.msra.mxu0 %v142
    %405 = vmatprep.subr.mxu0 %v139
    %406 = vmatpush1.msra.mxu0 %v138
    %407 = vmatprep.subr.mxu0 %v135
    %408 = vmatpush1.msra.mxu0 %v134
    %409 = vmatprep.subr.mxu0 %v131
    %410 = vmatpush1.msra.mxu0 %v130
    %411 = vmatprep.subr.mxu0 %v127
    %412 = vmatpush1.msra.mxu0 %v126
    %413 = vmatprep.subr.mxu0 %v123
    %414 = vmatpush1.msra.mxu0 %v122
    %415 = vmatprep.subr.mxu0 %v119
    %416 = vmatpush1.msra.mxu0 %v118
    %417 = vmatprep.subr.mxu0 %v115
    %418 = vmatpush1.msra.mxu0 %v114
    %419 = vmatprep.subr.mxu0 %v111
    %420 = vmatpush1.msra.mxu0 %v110
    %421 = vmatprep.subr.mxu0 %v107
    %422 = vmatpush1.msra.mxu0 %v106
    %423 = vmatprep.subr.mxu0 %v103
    %424 = vmatpush1.msra.mxu0 %v102
    %425 = vmatprep.subr.mxu0 %v99
    %426 = vmatpush1.msra.mxu0 %v98
    %427 = vmatprep.subr.mxu0 %v95
    %428 = vmatpush1.msra.mxu0 %v94
    %429 = vmatprep.subr.mxu0 %v91
    %430 = vmatpush1.msra.mxu0 %v90
    %431 = vmatprep.subr.mxu0 %v87
    %432 = vmatpush1.msra.mxu0 %v86
    %433 = vmatprep.subr.mxu0 %v83
    %434 = vmatpush1.msra.mxu0 %v82
    %435 = vmatprep.subr.mxu0 0.0
    %436 = vmatpush2.msra.mxu0 0.0
    %437 = vmatprep.subr.mxu0 0.0
    %438 = vmatpush2.msra.mxu0 0.0
    %439 = vmatprep.subr.mxu0 0.0
    %440 = vmatpush2.msra.mxu0 0.0
    %441 = vmatprep.subr.mxu0 0.0
    %442 = vmatpush2.msra.mxu0 0.0
    %443 = vmatprep.subr.mxu0 0.0
    %444 = vmatpush2.msra.mxu0 0.0
    %445 = vmatprep.subr.mxu0 0.0
    %446 = vmatpush2.msra.mxu0 0.0
    %447 = vmatprep.subr.mxu0 0.0
    %448 = vmatpush2.msra.mxu0 0.0
    %449 = vmatprep.subr.mxu0 0.0
    %450 = vmatpush2.msra.mxu0 0.0
    %451 = vmatprep.subr.mxu0 0.0
    %452 = vmatpush2.msra.mxu0 0.0
    %453 = vmatprep.subr.mxu0 0.0
    %454 = vmatpush2.msra.mxu0 0.0
    %455 = vmatprep.subr.mxu0 0.0
    %456 = vmatpush2.msra.mxu0 0.0
    %457 = vmatprep.subr.mxu0 0.0
    %458 = vmatpush2.msra.mxu0 0.0
    %459 = vmatprep.subr.mxu0 0.0
    %460 = vmatpush2.msra.mxu0 0.0
    %461 = vmatprep.subr.mxu0 0.0
    %462 = vmatpush2.msra.mxu0 0.0
    %463 = vmatprep.subr.mxu0 0.0
    %464 = vmatpush2.msra.mxu0 0.0
    %465 = vmatprep.subr.mxu0 0.0
    %466 = vmatpush2.msra.mxu0 0.0
    %467 = vmatprep.mubr.f32.mxu0 0.0
    %468 = vmatmul.mubr.f32.gmra.mxu0 %v321
    %v469 = vpop.f32.mrf.mxu0
    %v470 = vadd.f32 0.0, %v469
    %v471 = vpop.f32.mrf.mxu0
    %v472 = vadd.f32 0.0, %v471
    %473 = vdwg.mxu0
    %v474 = vadd.f32 %v328, %v399
    %v475 = vadd.f32 %v329, %v401
    %v476 = vadd.f32 %v330, %v470
    %v477 = vadd.f32 %v331, %v472
    %v478 = vxor.u32 %v474, 2147483648
    %v479 = vxor.u32 %v475, 2147483648
    %v480 = vmul.f32 %v478, 1.442695
    %v481 = vpow.pop %v480
    %v482 = vmul.f32 %v479, 1.442695
    %v483 = vpow.pop %v482
    %v484 = vadd.f32 %v481, 1.0
    %v485 = vadd.f32 %v483, 1.0
    %v486 = vrcp.pop %v484
    %v487 = vmul.f32 1.0, %v486
    %v488 = vrcp.pop %v485
    %v489 = vmul.f32 1.0, %v488
    %v490 = vtanh.pop %v476
    %v491 = vxor.u32 %v477, 2147483648
    %v492 = vmul.f32 %v491, 1.442695
    %v493 = vpow.pop %v492
    %v494 = vadd.f32 %v493, 1.0
    %v495 = vrcp.pop %v494
    %v496 = vmul.f32 1.0, %v495
    %v497 = vmul.f32 %v489, %v319
    %v498 = vmul.f32 %v487, %v490
    %v499 = vadd.f32 %v497, %v498
    %v500 = vtanh.pop %v499
    %v501 = vmul.f32 %v496, %v500
    %s502 = scalar_lea.vmem [#allocation12], 24
    %503 = vst [vmem:[%s502] sm:$0xff] %v489
    %504 = vst [vmem:[%s502 + $0x8] sm:$0xff] %v501
    %505 = vst [vmem:[%s502 + $0x10] sm:$0xff] %v490
    %s506 = scalar_lea.vmem [#allocation4], 32
    %v507 = vld [vmem:[%s506] sm:$0xff]
    %v508 = vld [vmem:[%s506 + $0x8] sm:$0xff]
    %v509 = vunpack.c.l.bf16 %v507
    %v510 = vunpack.c.h.bf16 %v507
    %v511 = vunpack.c.l.bf16 %v508
    %v512 = vunpack.c.h.bf16 %v508
    %513 = vmatprep.subr.mxu0 %v141
    %514 = vmatpush1.msra.mxu0 %v140
    %515 = vmatprep.subr.mxu0 %v137
    %516 = vmatpush1.msra.mxu0 %v136
    %517 = vmatprep.subr.mxu0 %v133
    %518 = vmatpush1.msra.mxu0 %v132
    %519 = vmatprep.subr.mxu0 %v129
    %520 = vmatpush1.msra.mxu0 %v128
    %521 = vmatprep.subr.mxu0 %v125
    %522 = vmatpush1.msra.mxu0 %v124
    %523 = vmatprep.subr.mxu0 %v121
    %524 = vmatpush1.msra.mxu0 %v120
    %525 = vmatprep.subr.mxu0 %v117
    %526 = vmatpush1.msra.mxu0 %v116
    %527 = vmatprep.subr.mxu0 %v113
    %528 = vmatpush1.msra.mxu0 %v112
    %529 = vmatprep.subr.mxu0 %v109
    %530 = vmatpush1.msra.mxu0 %v108
    %531 = vmatprep.subr.mxu0 %v105
    %532 = vmatpush1.msra.mxu0 %v104
    %533 = vmatprep.subr.mxu0 %v101
    %534 = vmatpush1.msra.mxu0 %v100
    %535 = vmatprep.subr.mxu0 %v97
    %536 = vmatpush1.msra.mxu0 %v96
    %537 = vmatprep.subr.mxu0 %v93
    %538 = vmatpush1.msra.mxu0 %v92
    %539 = vmatprep.subr.mxu0 %v89
    %540 = vmatpush1.msra.mxu0 %v88
    %541 = vmatprep.subr.mxu0 %v85
    %542 = vmatpush1.msra.mxu0 %v84
    %543 = vmatprep.subr.mxu0 %v81
    %544 = vmatpush1.msra.mxu0 %v80
    %545 = vmatprep.subr.mxu0 0.0
    %546 = vmatpush2.msra.mxu0 0.0
    %547 = vmatprep.subr.mxu0 0.0
    %548 = vmatpush2.msra.mxu0 0.0
    %549 = vmatprep.subr.mxu0 0.0
    %550 = vmatpush2.msra.mxu0 0.0
    %551 = vmatprep.subr.mxu0 0.0
    %552 = vmatpush2.msra.mxu0 0.0
    %553 = vmatprep.subr.mxu0 0.0
    %554 = vmatpush2.msra.mxu0 0.0
    %555 = vmatprep.subr.mxu0 0.0
    %556 = vmatpush2.msra.mxu0 0.0
    %557 = vmatprep.subr.mxu0 0.0
    %558 = vmatpush2.msra.mxu0 0.0
    %559 = vmatprep.subr.mxu0 0.0
    %560 = vmatpush2.msra.mxu0 0.0
    %561 = vmatprep.subr.mxu0 0.0
    %562 = vmatpush2.msra.mxu0 0.0
    %563 = vmatprep.subr.mxu0 0.0
    %564 = vmatpush2.msra.mxu0 0.0
    %565 = vmatprep.subr.mxu0 0.0
    %566 = vmatpush2.msra.mxu0 0.0
    %567 = vmatprep.subr.mxu0 0.0
    %568 = vmatpush2.msra.mxu0 0.0
    %569 = vmatprep.subr.mxu0 0.0
    %570 = vmatpush2.msra.mxu0 0.0
    %571 = vmatprep.subr.mxu0 0.0
    %572 = vmatpush2.msra.mxu0 0.0
    %573 = vmatprep.subr.mxu0 0.0
    %574 = vmatpush2.msra.mxu0 0.0
    %575 = vmatprep.subr.mxu0 0.0
    %576 = vmatpush2.msra.mxu0 0.0
    %577 = vmatprep.mubr.f32.mxu0 0.0
    %578 = vmatmul.mubr.f32.gmra.mxu0 %v501
    %v579 = vpop.f32.mrf.mxu0
    %v580 = vadd.f32 0.0, %v579
    %v581 = vpop.f32.mrf.mxu0
    %v582 = vadd.f32 0.0, %v581
    %583 = vdwg.mxu0
    %584 = vmatprep.subr.mxu0 %v143
    %585 = vmatpush1.msra.mxu0 %v142
    %586 = vmatprep.subr.mxu0 %v139
    %587 = vmatpush1.msra.mxu0 %v138
    %588 = vmatprep.subr.mxu0 %v135
    %589 = vmatpush1.msra.mxu0 %v134
    %590 = vmatprep.subr.mxu0 %v131
    %591 = vmatpush1.msra.mxu0 %v130
    %592 = vmatprep.subr.mxu0 %v127
    %593 = vmatpush1.msra.mxu0 %v126
    %594 = vmatprep.subr.mxu0 %v123
    %595 = vmatpush1.msra.mxu0 %v122
    %596 = vmatprep.subr.mxu0 %v119
    %597 = vmatpush1.msra.mxu0 %v118
    %598 = vmatprep.subr.mxu0 %v115
    %599 = vmatpush1.msra.mxu0 %v114
    %600 = vmatprep.subr.mxu0 %v111
    %601 = vmatpush1.msra.mxu0 %v110
    %602 = vmatprep.subr.mxu0 %v107
    %603 = vmatpush1.msra.mxu0 %v106
    %604 = vmatprep.subr.mxu0 %v103
    %605 = vmatpush1.msra.mxu0 %v102
    %606 = vmatprep.subr.mxu0 %v99
    %607 = vmatpush1.msra.mxu0 %v98
    %608 = vmatprep.subr.mxu0 %v95
    %609 = vmatpush1.msra.mxu0 %v94
    %610 = vmatprep.subr.mxu0 %v91
    %611 = vmatpush1.msra.mxu0 %v90
    %612 = vmatprep.subr.mxu0 %v87
    %613 = vmatpush1.msra.mxu0 %v86
    %614 = vmatprep.subr.mxu0 %v83
    %615 = vmatpush1.msra.mxu0 %v82
    %616 = vmatprep.subr.mxu0 0.0
    %617 = vmatpush2.msra.mxu0 0.0
    %618 = vmatprep.subr.mxu0 0.0
    %619 = vmatpush2.msra.mxu0 0.0
    %620 = vmatprep.subr.mxu0 0.0
    %621 = vmatpush2.msra.mxu0 0.0
    %622 = vmatprep.subr.mxu0 0.0
    %623 = vmatpush2.msra.mxu0 0.0
    %624 = vmatprep.subr.mxu0 0.0
    %625 = vmatpush2.msra.mxu0 0.0
    %626 = vmatprep.subr.mxu0 0.0
    %627 = vmatpush2.msra.mxu0 0.0
    %628 = vmatprep.subr.mxu0 0.0
    %629 = vmatpush2.msra.mxu0 0.0
    %630 = vmatprep.subr.mxu0 0.0
    %631 = vmatpush2.msra.mxu0 0.0
    %632 = vmatprep.subr.mxu0 0.0
    %633 = vmatpush2.msra.mxu0 0.0
    %634 = vmatprep.subr.mxu0 0.0
    %635 = vmatpush2.msra.mxu0 0.0
    %636 = vmatprep.subr.mxu0 0.0
    %637 = vmatpush2.msra.mxu0 0.0
    %638 = vmatprep.subr.mxu0 0.0
    %639 = vmatpush2.msra.mxu0 0.0
    %640 = vmatprep.subr.mxu0 0.0
    %641 = vmatpush2.msra.mxu0 0.0
    %642 = vmatprep.subr.mxu0 0.0
    %643 = vmatpush2.msra.mxu0 0.0
    %644 = vmatprep.subr.mxu0 0.0
    %645 = vmatpush2.msra.mxu0 0.0
    %646 = vmatprep.subr.mxu0 0.0
    %647 = vmatpush2.msra.mxu0 0.0
    %648 = vmatprep.mubr.f32.mxu0 0.0
    %649 = vmatmul.mubr.f32.gmra.mxu0 %v501
    %v650 = vpop.f32.mrf.mxu0
    %v651 = vadd.f32 0.0, %v650
    %v652 = vpop.f32.mrf.mxu0
    %v653 = vadd.f32 0.0, %v652
    %654 = vdwg.mxu0
    %v655 = vadd.f32 %v509, %v580
    %v656 = vadd.f32 %v510, %v582
    %v657 = vadd.f32 %v511, %v651
    %v658 = vadd.f32 %v512, %v653
    %v659 = vxor.u32 %v655, 2147483648
    %v660 = vxor.u32 %v656, 2147483648
    %v661 = vmul.f32 %v659, 1.442695
    %v662 = vpow.pop %v661
    %v663 = vmul.f32 %v660, 1.442695
    %v664 = vpow.pop %v663
    %v665 = vadd.f32 %v662, 1.0
    %v666 = vadd.f32 %v664, 1.0
    %v667 = vrcp.pop %v665
    %v668 = vmul.f32 1.0, %v667
    %v669 = vrcp.pop %v666
    %v670 = vmul.f32 1.0, %v669
    %v671 = vtanh.pop %v657
    %v672 = vxor.u32 %v658, 2147483648
    %v673 = vmul.f32 %v672, 1.442695
    %v674 = vpow.pop %v673
    %v675 = vadd.f32 %v674, 1.0
    %v676 = vrcp.pop %v675
    %v677 = vmul.f32 1.0, %v676
    %v678 = vmul.f32 %v670, %v499
    %v679 = vmul.f32 %v668, %v671
    %v680 = vadd.f32 %v678, %v679
    %v681 = vtanh.pop %v680
    %v682 = vmul.f32 %v677, %v681
    %s683 = scalar_lea.vmem [#allocation12], 48
    %684 = vst [vmem:[%s683] sm:$0xff] %v670
    %685 = vst [vmem:[%s683 + $0x8] sm:$0xff] %v682
    %686 = vst [vmem:[%s683 + $0x10] sm:$0xff] %v671
    %s687 = scalar_lea.vmem [#allocation4], 48
    %v688 = vld [vmem:[%s687] sm:$0xff]
    %v689 = vld [vmem:[%s687 + $0x8] sm:$0xff]
    %v690 = vunpack.c.l.bf16 %v688
    %v691 = vunpack.c.h.bf16 %v688
    %v692 = vunpack.c.l.bf16 %v689
    %v693 = vunpack.c.h.bf16 %v689
    %694 = vmatprep.subr.mxu0 %v141
    %695 = vmatpush1.msra.mxu0 %v140
    %696 = vmatprep.subr.mxu0 %v137
    %697 = vmatpush1.msra.mxu0 %v136
    %698 = vmatprep.subr.mxu0 %v133
    %699 = vmatpush1.msra.mxu0 %v132
    %700 = vmatprep.subr.mxu0 %v129
    %701 = vmatpush1.msra.mxu0 %v128
    %702 = vmatprep.subr.mxu0 %v125
    %703 = vmatpush1.msra.mxu0 %v124
    %704 = vmatprep.subr.mxu0 %v121
    %705 = vmatpush1.msra.mxu0 %v120
    %706 = vmatprep.subr.mxu0 %v117
    %707 = vmatpush1.msra.mxu0 %v116
    %708 = vmatprep.subr.mxu0 %v113
    %709 = vmatpush1.msra.mxu0 %v112
    %710 = vmatprep.subr.mxu0 %v109
    %711 = vmatpush1.msra.mxu0 %v108
    %712 = vmatprep.subr.mxu0 %v105
    %713 = vmatpush1.msra.mxu0 %v104
    %714 = vmatprep.subr.mxu0 %v101
    %715 = vmatpush1.msra.mxu0 %v100
    %716 = vmatprep.subr.mxu0 %v97
    %717 = vmatpush1.msra.mxu0 %v96
    %718 = vmatprep.subr.mxu0 %v93
    %719 = vmatpush1.msra.mxu0 %v92
    %720 = vmatprep.subr.mxu0 %v89
    %721 = vmatpush1.msra.mxu0 %v88
    %722 = vmatprep.subr.mxu0 %v85
    %723 = vmatpush1.msra.mxu0 %v84
    %724 = vmatprep.subr.mxu0 %v81
    %725 = vmatpush1.msra.mxu0 %v80
    %726 = vmatprep.subr.mxu0 0.0
    %727 = vmatpush2.msra.mxu0 0.0
    %728 = vmatprep.subr.mxu0 0.0
    %729 = vmatpush2.msra.mxu0 0.0
    %730 = vmatprep.subr.mxu0 0.0
    %731 = vmatpush2.msra.mxu0 0.0
    %732 = vmatprep.subr.mxu0 0.0
    %733 = vmatpush2.msra.mxu0 0.0
    %734 = vmatprep.subr.mxu0 0.0
    %735 = vmatpush2.msra.mxu0 0.0
    %736 = vmatprep.subr.mxu0 0.0
    %737 = vmatpush2.msra.mxu0 0.0
    %738 = vmatprep.subr.mxu0 0.0
    %739 = vmatpush2.msra.mxu0 0.0
    %740 = vmatprep.subr.mxu0 0.0
    %741 = vmatpush2.msra.mxu0 0.0
    %742 = vmatprep.subr.mxu0 0.0
    %743 = vmatpush2.msra.mxu0 0.0
    %744 = vmatprep.subr.mxu0 0.0
    %745 = vmatpush2.msra.mxu0 0.0
    %746 = vmatprep.subr.mxu0 0.0
    %747 = vmatpush2.msra.mxu0 0.0
    %748 = vmatprep.subr.mxu0 0.0
    %749 = vmatpush2.msra.mxu0 0.0
    %750 = vmatprep.subr.mxu0 0.0
    %751 = vmatpush2.msra.mxu0 0.0
    %752 = vmatprep.subr.mxu0 0.0
    %753 = vmatpush2.msra.mxu0 0.0
    %754 = vmatprep.subr.mxu0 0.0
    %755 = vmatpush2.msra.mxu0 0.0
    %756 = vmatprep.subr.mxu0 0.0
    %757 = vmatpush2.msra.mxu0 0.0
    %758 = vmatprep.mubr.f32.mxu0 0.0
    %759 = vmatmul.mubr.f32.gmra.mxu0 %v682
    %v760 = vpop.f32.mrf.mxu0
    %v761 = vadd.f32 0.0, %v760
    %v762 = vpop.f32.mrf.mxu0
    %v763 = vadd.f32 0.0, %v762
    %764 = vdwg.mxu0
    %765 = vmatprep.subr.mxu0 %v143
    %766 = vmatpush1.msra.mxu0 %v142
    %767 = vmatprep.subr.mxu0 %v139
    %768 = vmatpush1.msra.mxu0 %v138
    %769 = vmatprep.subr.mxu0 %v135
    %770 = vmatpush1.msra.mxu0 %v134
    %771 = vmatprep.subr.mxu0 %v131
    %772 = vmatpush1.msra.mxu0 %v130
    %773 = vmatprep.subr.mxu0 %v127
    %774 = vmatpush1.msra.mxu0 %v126
    %775 = vmatprep.subr.mxu0 %v123
    %776 = vmatpush1.msra.mxu0 %v122
    %777 = vmatprep.subr.mxu0 %v119
    %778 = vmatpush1.msra.mxu0 %v118
    %779 = vmatprep.subr.mxu0 %v115
    %780 = vmatpush1.msra.mxu0 %v114
    %781 = vmatprep.subr.mxu0 %v111
    %782 = vmatpush1.msra.mxu0 %v110
    %783 = vmatprep.subr.mxu0 %v107
    %784 = vmatpush1.msra.mxu0 %v106
    %785 = vmatprep.subr.mxu0 %v103
    %786 = vmatpush1.msra.mxu0 %v102
    %787 = vmatprep.subr.mxu0 %v99
    %788 = vmatpush1.msra.mxu0 %v98
    %789 = vmatprep.subr.mxu0 %v95
    %790 = vmatpush1.msra.mxu0 %v94
    %791 = vmatprep.subr.mxu0 %v91
    %792 = vmatpush1.msra.mxu0 %v90
    %793 = vmatprep.subr.mxu0 %v87
    %794 = vmatpush1.msra.mxu0 %v86
    %795 = vmatprep.subr.mxu0 %v83
    %796 = vmatpush1.msra.mxu0 %v82
    %797 = vmatprep.subr.mxu0 0.0
    %798 = vmatpush2.msra.mxu0 0.0
    %799 = vmatprep.subr.mxu0 0.0
    %800 = vmatpush2.msra.mxu0 0.0
    %801 = vmatprep.subr.mxu0 0.0
    %802 = vmatpush2.msra.mxu0 0.0
    %803 = vmatprep.subr.mxu0 0.0
    %804 = vmatpush2.msra.mxu0 0.0
    %805 = vmatprep.subr.mxu0 0.0
    %806 = vmatpush2.msra.mxu0 0.0
    %807 = vmatprep.subr.mxu0 0.0
    %808 = vmatpush2.msra.mxu0 0.0
    %809 = vmatprep.subr.mxu0 0.0
    %810 = vmatpush2.msra.mxu0 0.0
    %811 = vmatprep.subr.mxu0 0.0
    %812 = vmatpush2.msra.mxu0 0.0
    %813 = vmatprep.subr.mxu0 0.0
    %814 = vmatpush2.msra.mxu0 0.0
    %815 = vmatprep.subr.mxu0 0.0
    %816 = vmatpush2.msra.mxu0 0.0
    %817 = vmatprep.subr.mxu0 0.0
    %818 = vmatpush2.msra.mxu0 0.0
    %819 = vmatprep.subr.mxu0 0.0
    %820 = vmatpush2.msra.mxu0 0.0
    %821 = vmatprep.subr.mxu0 0.0
    %822 = vmatpush2.msra.mxu0 0.0
    %823 = vmatprep.subr.mxu0 0.0
    %824 = vmatpush2.msra.mxu0 0.0
    %825 = vmatprep.subr.mxu0 0.0
    %826 = vmatpush2.msra.mxu0 0.0
    %827 = vmatprep.subr.mxu0 0.0
    %828 = vmatpush2.msra.mxu0 0.0
    %829 = vmatprep.mubr.f32.mxu0 0.0
    %830 = vmatmul.mubr.f32.gmra.mxu0 %v682
    %v831 = vpop.f32.mrf.mxu0
    %v832 = vadd.f32 0.0, %v831
    %v833 = vpop.f32.mrf.mxu0
    %v834 = vadd.f32 0.0, %v833
    %835 = vdwg.mxu0
    %v836 = vadd.f32 %v690, %v761
    %v837 = vadd.f32 %v691, %v763
    %v838 = vadd.f32 %v692, %v832
    %v839 = vadd.f32 %v693, %v834
    %v840 = vxor.u32 %v836, 2147483648
    %v841 = vxor.u32 %v837, 2147483648
    %v842 = vmul.f32 %v840, 1.442695
    %v843 = vpow.pop %v842
    %v844 = vmul.f32 %v841, 1.442695
    %v845 = vpow.pop %v844
    %v846 = vadd.f32 %v843, 1.0
    %v847 = vadd.f32 %v845, 1.0
    %v848 = vrcp.pop %v846
    %v849 = vmul.f32 1.0, %v848
    %v850 = vrcp.pop %v847
    %v851 = vmul.f32 1.0, %v850
    %v852 = vtanh.pop %v838
    %v853 = vxor.u32 %v839, 2147483648
    %v854 = vmul.f32 %v853, 1.442695
    %v855 = vpow.pop %v854
    %v856 = vadd.f32 %v855, 1.0
    %v857 = vrcp.pop %v856
    %v858 = vmul.f32 1.0, %v857
    %v859 = vmul.f32 %v851, %v680
    %v860 = vmul.f32 %v849, %v852
    %v861 = vadd.f32 %v859, %v860
    %v862 = vtanh.pop %v861
    %v863 = vmul.f32 %v858, %v862
    %s864 = scalar_lea.vmem [#allocation12], 72
    %865 = vst [vmem:[%s864] sm:$0xff] %v851
    %866 = vst [vmem:[%s864 + $0x8] sm:$0xff] %v863
    %867 = vst [vmem:[%s864 + $0x10] sm:$0xff] %v852
    %s868 = scalar_lea.vmem [#allocation4], 64
    %v869 = vld [vmem:[%s868] sm:$0xff]
    %v870 = vld [vmem:[%s868 + $0x8] sm:$0xff]
    %v871 = vunpack.c.l.bf16 %v869
    %v872 = vunpack.c.h.bf16 %v869
    %v873 = vunpack.c.l.bf16 %v870
    %v874 = vunpack.c.h.bf16 %v870
    %875 = vmatprep.subr.mxu0 %v141
    %876 = vmatpush1.msra.mxu0 %v140
    %877 = vmatprep.subr.mxu0 %v137
    %878 = vmatpush1.msra.mxu0 %v136
    %879 = vmatprep.subr.mxu0 %v133
    %880 = vmatpush1.msra.mxu0 %v132
    %881 = vmatprep.subr.mxu0 %v129
    %882 = vmatpush1.msra.mxu0 %v128
    %883 = vmatprep.subr.mxu0 %v125
    %884 = vmatpush1.msra.mxu0 %v124
    %885 = vmatprep.subr.mxu0 %v121
    %886 = vmatpush1.msra.mxu0 %v120
    %887 = vmatprep.subr.mxu0 %v117
    %888 = vmatpush1.msra.mxu0 %v116
    %889 = vmatprep.subr.mxu0 %v113
    %890 = vmatpush1.msra.mxu0 %v112
    %891 = vmatprep.subr.mxu0 %v109
    %892 = vmatpush1.msra.mxu0 %v108
    %893 = vmatprep.subr.mxu0 %v105
    %894 = vmatpush1.msra.mxu0 %v104
    %895 = vmatprep.subr.mxu0 %v101
    %896 = vmatpush1.msra.mxu0 %v100
    %897 = vmatprep.subr.mxu0 %v97
    %898 = vmatpush1.msra.mxu0 %v96
    %899 = vmatprep.subr.mxu0 %v93
    %900 = vmatpush1.msra.mxu0 %v92
    %901 = vmatprep.subr.mxu0 %v89
    %902 = vmatpush1.msra.mxu0 %v88
    %903 = vmatprep.subr.mxu0 %v85
    %904 = vmatpush1.msra.mxu0 %v84
    %905 = vmatprep.subr.mxu0 %v81
    %906 = vmatpush1.msra.mxu0 %v80
    %907 = vmatprep.subr.mxu0 0.0
    %908 = vmatpush2.msra.mxu0 0.0
    %909 = vmatprep.subr.mxu0 0.0
    %910 = vmatpush2.msra.mxu0 0.0
    %911 = vmatprep.subr.mxu0 0.0
    %912 = vmatpush2.msra.mxu0 0.0
    %913 = vmatprep.subr.mxu0 0.0
    %914 = vmatpush2.msra.mxu0 0.0
    %915 = vmatprep.subr.mxu0 0.0
    %916 = vmatpush2.msra.mxu0 0.0
    %917 = vmatprep.subr.mxu0 0.0
    %918 = vmatpush2.msra.mxu0 0.0
    %919 = vmatprep.subr.mxu0 0.0
    %920 = vmatpush2.msra.mxu0 0.0
    %921 = vmatprep.subr.mxu0 0.0
    %922 = vmatpush2.msra.mxu0 0.0
    %923 = vmatprep.subr.mxu0 0.0
    %924 = vmatpush2.msra.mxu0 0.0
    %925 = vmatprep.subr.mxu0 0.0
    %926 = vmatpush2.msra.mxu0 0.0
    %927 = vmatprep.subr.mxu0 0.0
    %928 = vmatpush2.msra.mxu0 0.0
    %929 = vmatprep.subr.mxu0 0.0
    %930 = vmatpush2.msra.mxu0 0.0
    %931 = vmatprep.subr.mxu0 0.0
    %932 = vmatpush2.msra.mxu0 0.0
    %933 = vmatprep.subr.mxu0 0.0
    %934 = vmatpush2.msra.mxu0 0.0
    %935 = vmatprep.subr.mxu0 0.0
    %936 = vmatpush2.msra.mxu0 0.0
    %937 = vmatprep.subr.mxu0 0.0
    %938 = vmatpush2.msra.mxu0 0.0
    %939 = vmatprep.mubr.f32.mxu0 0.0
    %940 = vmatmul.mubr.f32.gmra.mxu0 %v863
    %v941 = vpop.f32.mrf.mxu0
    %v942 = vadd.f32 0.0, %v941
    %v943 = vpop.f32.mrf.mxu0
    %v944 = vadd.f32 0.0, %v943
    %945 = vdwg.mxu0
    %946 = vmatprep.subr.mxu0 %v143
    %947 = vmatpush1.msra.mxu0 %v142
    %948 = vmatprep.subr.mxu0 %v139
    %949 = vmatpush1.msra.mxu0 %v138
    %950 = vmatprep.subr.mxu0 %v135
    %951 = vmatpush1.msra.mxu0 %v134
    %952 = vmatprep.subr.mxu0 %v131
    %953 = vmatpush1.msra.mxu0 %v130
    %954 = vmatprep.subr.mxu0 %v127
    %955 = vmatpush1.msra.mxu0 %v126
    %956 = vmatprep.subr.mxu0 %v123
    %957 = vmatpush1.msra.mxu0 %v122
    %958 = vmatprep.subr.mxu0 %v119
    %959 = vmatpush1.msra.mxu0 %v118
    %960 = vmatprep.subr.mxu0 %v115
    %961 = vmatpush1.msra.mxu0 %v114
    %962 = vmatprep.subr.mxu0 %v111
    %963 = vmatpush1.msra.mxu0 %v110
    %964 = vmatprep.subr.mxu0 %v107
    %965 = vmatpush1.msra.mxu0 %v106
    %966 = vmatprep.subr.mxu0 %v103
    %967 = vmatpush1.msra.mxu0 %v102
    %968 = vmatprep.subr.mxu0 %v99
    %969 = vmatpush1.msra.mxu0 %v98
    %970 = vmatprep.subr.mxu0 %v95
    %971 = vmatpush1.msra.mxu0 %v94
    %972 = vmatprep.subr.mxu0 %v91
    %973 = vmatpush1.msra.mxu0 %v90
    %974 = vmatprep.subr.mxu0 %v87
    %975 = vmatpush1.msra.mxu0 %v86
    %976 = vmatprep.subr.mxu0 %v83
    %977 = vmatpush1.msra.mxu0 %v82
    %978 = vmatprep.subr.mxu0 0.0
    %979 = vmatpush2.msra.mxu0 0.0
    %980 = vmatprep.subr.mxu0 0.0
    %981 = vmatpush2.msra.mxu0 0.0
    %982 = vmatprep.subr.mxu0 0.0
    %983 = vmatpush2.msra.mxu0 0.0
    %984 = vmatprep.subr.mxu0 0.0
    %985 = vmatpush2.msra.mxu0 0.0
    %986 = vmatprep.subr.mxu0 0.0
    %987 = vmatpush2.msra.mxu0 0.0
    %988 = vmatprep.subr.mxu0 0.0
    %989 = vmatpush2.msra.mxu0 0.0
    %990 = vmatprep.subr.mxu0 0.0
    %991 = vmatpush2.msra.mxu0 0.0
    %992 = vmatprep.subr.mxu0 0.0
    %993 = vmatpush2.msra.mxu0 0.0
    %994 = vmatprep.subr.mxu0 0.0
    %995 = vmatpush2.msra.mxu0 0.0
    %996 = vmatprep.subr.mxu0 0.0
    %997 = vmatpush2.msra.mxu0 0.0
    %998 = vmatprep.subr.mxu0 0.0
    %999 = vmatpush2.msra.mxu0 0.0
    %1000 = vmatprep.subr.mxu0 0.0
    %1001 = vmatpush2.msra.mxu0 0.0
    %1002 = vmatprep.subr.mxu0 0.0
    %1003 = vmatpush2.msra.mxu0 0.0
    %1004 = vmatprep.subr.mxu0 0.0
    %1005 = vmatpush2.msra.mxu0 0.0
    %1006 = vmatprep.subr.mxu0 0.0
    %1007 = vmatpush2.msra.mxu0 0.0
    %1008 = vmatprep.subr.mxu0 0.0
    %1009 = vmatpush2.msra.mxu0 0.0
    %1010 = vmatprep.mubr.f32.mxu0 0.0
    %1011 = vmatmul.mubr.f32.gmra.mxu0 %v863
    %v1012 = vpop.f32.mrf.mxu0
    %v1013 = vadd.f32 0.0, %v1012
    %v1014 = vpop.f32.mrf.mxu0
    %v1015 = vadd.f32 0.0, %v1014
    %1016 = vdwg.mxu0
    %v1017 = vadd.f32 %v871, %v942
    %v1018 = vadd.f32 %v872, %v944
    %v1019 = vadd.f32 %v873, %v1013
    %v1020 = vadd.f32 %v874, %v1015
    %v1021 = vxor.u32 %v1017, 2147483648
    %v1022 = vxor.u32 %v1018, 2147483648
    %v1023 = vmul.f32 %v1021, 1.442695
    %v1024 = vpow.pop %v1023
    %v1025 = vmul.f32 %v1022, 1.442695
    %v1026 = vpow.pop %v1025
    %v1027 = vadd.f32 %v1024, 1.0
    %v1028 = vadd.f32 %v1026, 1.0
    %v1029 = vrcp.pop %v1027
    %v1030 = vmul.f32 1.0, %v1029
    %v1031 = vrcp.pop %v1028
    %v1032 = vmul.f32 1.0, %v1031
    %v1033 = vtanh.pop %v1019
    %v1034 = vxor.u32 %v1020, 2147483648
    %v1035 = vmul.f32 %v1034, 1.442695
    %v1036 = vpow.pop %v1035
    %v1037 = vadd.f32 %v1036, 1.0
    %v1038 = vrcp.pop %v1037
    %v1039 = vmul.f32 1.0, %v1038
    %v1040 = vmul.f32 %v1032, %v861
    %v1041 = vmul.f32 %v1030, %v1033
    %v1042 = vadd.f32 %v1040, %v1041
    %v1043 = vtanh.pop %v1042
    %v1044 = vmul.f32 %v1039, %v1043
    %s1045 = scalar_lea.vmem [#allocation12], 96
    %1046 = vst [vmem:[%s1045] sm:$0xff] %v1032
    %1047 = vst [vmem:[%s1045 + $0x8] sm:$0xff] %v1044
    %1048 = vst [vmem:[%s1045 + $0x10] sm:$0xff] %v1033
    %s1049 = scalar_lea.vmem [#allocation4], 80
    %v1050 = vld [vmem:[%s1049] sm:$0xff]
    %v1051 = vld [vmem:[%s1049 + $0x8] sm:$0xff]
    %v1052 = vunpack.c.l.bf16 %v1050
    %v1053 = vunpack.c.h.bf16 %v1050
    %v1054 = vunpack.c.l.bf16 %v1051
    %v1055 = vunpack.c.h.bf16 %v1051
    %1056 = vmatprep.subr.mxu0 %v141
    %1057 = vmatpush1.msra.mxu0 %v140
    %1058 = vmatprep.subr.mxu0 %v137
    %1059 = vmatpush1.msra.mxu0 %v136
    %1060 = vmatprep.subr.mxu0 %v133
    %1061 = vmatpush1.msra.mxu0 %v132
    %1062 = vmatprep.subr.mxu0 %v129
    %1063 = vmatpush1.msra.mxu0 %v128
    %1064 = vmatprep.subr.mxu0 %v125
    %1065 = vmatpush1.msra.mxu0 %v124
    %1066 = vmatprep.subr.mxu0 %v121
    %1067 = vmatpush1.msra.mxu0 %v120
    %1068 = vmatprep.subr.mxu0 %v117
    %1069 = vmatpush1.msra.mxu0 %v116
    %1070 = vmatprep.subr.mxu0 %v113
    %1071 = vmatpush1.msra.mxu0 %v112
    %1072 = vmatprep.subr.mxu0 %v109
    %1073 = vmatpush1.msra.mxu0 %v108
    %1074 = vmatprep.subr.mxu0 %v105
    %1075 = vmatpush1.msra.mxu0 %v104
    %1076 = vmatprep.subr.mxu0 %v101
    %1077 = vmatpush1.msra.mxu0 %v100
    %1078 = vmatprep.subr.mxu0 %v97
    %1079 = vmatpush1.msra.mxu0 %v96
    %1080 = vmatprep.subr.mxu0 %v93
    %1081 = vmatpush1.msra.mxu0 %v92
    %1082 = vmatprep.subr.mxu0 %v89
    %1083 = vmatpush1.msra.mxu0 %v88
    %1084 = vmatprep.subr.mxu0 %v85
    %1085 = vmatpush1.msra.mxu0 %v84
    %1086 = vmatprep.subr.mxu0 %v81
    %1087 = vmatpush1.msra.mxu0 %v80
    %1088 = vmatprep.subr.mxu0 0.0
    %1089 = vmatpush2.msra.mxu0 0.0
    %1090 = vmatprep.subr.mxu0 0.0
    %1091 = vmatpush2.msra.mxu0 0.0
    %1092 = vmatprep.subr.mxu0 0.0
    %1093 = vmatpush2.msra.mxu0 0.0
    %1094 = vmatprep.subr.mxu0 0.0
    %1095 = vmatpush2.msra.mxu0 0.0
    %1096 = vmatprep.subr.mxu0 0.0
    %1097 = vmatpush2.msra.mxu0 0.0
    %1098 = vmatprep.subr.mxu0 0.0
    %1099 = vmatpush2.msra.mxu0 0.0
    %1100 = vmatprep.subr.mxu0 0.0
    %1101 = vmatpush2.msra.mxu0 0.0
    %1102 = vmatprep.subr.mxu0 0.0
    %1103 = vmatpush2.msra.mxu0 0.0
    %1104 = vmatprep.subr.mxu0 0.0
    %1105 = vmatpush2.msra.mxu0 0.0
    %1106 = vmatprep.subr.mxu0 0.0
    %1107 = vmatpush2.msra.mxu0 0.0
    %1108 = vmatprep.subr.mxu0 0.0
    %1109 = vmatpush2.msra.mxu0 0.0
    %1110 = vmatprep.subr.mxu0 0.0
    %1111 = vmatpush2.msra.mxu0 0.0
    %1112 = vmatprep.subr.mxu0 0.0
    %1113 = vmatpush2.msra.mxu0 0.0
    %1114 = vmatprep.subr.mxu0 0.0
    %1115 = vmatpush2.msra.mxu0 0.0
    %1116 = vmatprep.subr.mxu0 0.0
    %1117 = vmatpush2.msra.mxu0 0.0
    %1118 = vmatprep.subr.mxu0 0.0
    %1119 = vmatpush2.msra.mxu0 0.0
    %1120 = vmatprep.mubr.f32.mxu0 0.0
    %1121 = vmatmul.mubr.f32.gmra.mxu0 %v1044
    %v1122 = vpop.f32.mrf.mxu0
    %v1123 = vadd.f32 0.0, %v1122
    %v1124 = vpop.f32.mrf.mxu0
    %v1125 = vadd.f32 0.0, %v1124
    %1126 = vdwg.mxu0
    %1127 = vmatprep.subr.mxu0 %v143
    %1128 = vmatpush1.msra.mxu0 %v142
    %1129 = vmatprep.subr.mxu0 %v139
    %1130 = vmatpush1.msra.mxu0 %v138
    %1131 = vmatprep.subr.mxu0 %v135
    %1132 = vmatpush1.msra.mxu0 %v134
    %1133 = vmatprep.subr.mxu0 %v131
    %1134 = vmatpush1.msra.mxu0 %v130
    %1135 = vmatprep.subr.mxu0 %v127
    %1136 = vmatpush1.msra.mxu0 %v126
    %1137 = vmatprep.subr.mxu0 %v123
    %1138 = vmatpush1.msra.mxu0 %v122
    %1139 = vmatprep.subr.mxu0 %v119
    %1140 = vmatpush1.msra.mxu0 %v118
    %1141 = vmatprep.subr.mxu0 %v115
    %1142 = vmatpush1.msra.mxu0 %v114
    %1143 = vmatprep.subr.mxu0 %v111
    %1144 = vmatpush1.msra.mxu0 %v110
    %1145 = vmatprep.subr.mxu0 %v107
    %1146 = vmatpush1.msra.mxu0 %v106
    %1147 = vmatprep.subr.mxu0 %v103
    %1148 = vmatpush1.msra.mxu0 %v102
    %1149 = vmatprep.subr.mxu0 %v99
    %1150 = vmatpush1.msra.mxu0 %v98
    %1151 = vmatprep.subr.mxu0 %v95
    %1152 = vmatpush1.msra.mxu0 %v94
    %1153 = vmatprep.subr.mxu0 %v91
    %1154 = vmatpush1.msra.mxu0 %v90
    %1155 = vmatprep.subr.mxu0 %v87
    %1156 = vmatpush1.msra.mxu0 %v86
    %1157 = vmatprep.subr.mxu0 %v83
    %1158 = vmatpush1.msra.mxu0 %v82
    %1159 = vmatprep.subr.mxu0 0.0
    %1160 = vmatpush2.msra.mxu0 0.0
    %1161 = vmatprep.subr.mxu0 0.0
    %1162 = vmatpush2.msra.mxu0 0.0
    %1163 = vmatprep.subr.mxu0 0.0
    %1164 = vmatpush2.msra.mxu0 0.0
    %1165 = vmatprep.subr.mxu0 0.0
    %1166 = vmatpush2.msra.mxu0 0.0
    %1167 = vmatprep.subr.mxu0 0.0
    %1168 = vmatpush2.msra.mxu0 0.0
    %1169 = vmatprep.subr.mxu0 0.0
    %1170 = vmatpush2.msra.mxu0 0.0
    %1171 = vmatprep.subr.mxu0 0.0
    %1172 = vmatpush2.msra.mxu0 0.0
    %1173 = vmatprep.subr.mxu0 0.0
    %1174 = vmatpush2.msra.mxu0 0.0
    %1175 = vmatprep.subr.mxu0 0.0
    %1176 = vmatpush2.msra.mxu0 0.0
    %1177 = vmatprep.subr.mxu0 0.0
    %1178 = vmatpush2.msra.mxu0 0.0
    %1179 = vmatprep.subr.mxu0 0.0
    %1180 = vmatpush2.msra.mxu0 0.0
    %1181 = vmatprep.subr.mxu0 0.0
    %1182 = vmatpush2.msra.mxu0 0.0
    %1183 = vmatprep.subr.mxu0 0.0
    %1184 = vmatpush2.msra.mxu0 0.0
    %1185 = vmatprep.subr.mxu0 0.0
    %1186 = vmatpush2.msra.mxu0 0.0
    %1187 = vmatprep.subr.mxu0 0.0
    %1188 = vmatpush2.msra.mxu0 0.0
    %1189 = vmatprep.subr.mxu0 0.0
    %1190 = vmatpush2.msra.mxu0 0.0
    %1191 = vmatprep.mubr.f32.mxu0 0.0
    %1192 = vmatmul.mubr.f32.gmra.mxu0 %v1044
    %v1193 = vpop.f32.mrf.mxu0
    %v1194 = vadd.f32 0.0, %v1193
    %v1195 = vpop.f32.mrf.mxu0
    %v1196 = vadd.f32 0.0, %v1195
    %1197 = vdwg.mxu0
    %v1198 = vadd.f32 %v1052, %v1123
    %v1199 = vadd.f32 %v1053, %v1125
    %v1200 = vadd.f32 %v1054, %v1194
    %v1201 = vadd.f32 %v1055, %v1196
    %v1202 = vxor.u32 %v1198, 2147483648
    %v1203 = vxor.u32 %v1199, 2147483648
    %v1204 = vmul.f32 %v1202, 1.442695
    %v1205 = vpow.pop %v1204
    %v1206 = vmul.f32 %v1203, 1.442695
    %v1207 = vpow.pop %v1206
    %v1208 = vadd.f32 %v1205, 1.0
    %v1209 = vadd.f32 %v1207, 1.0
    %v1210 = vrcp.pop %v1208
    %v1211 = vmul.f32 1.0, %v1210
    %v1212 = vrcp.pop %v1209
    %v1213 = vmul.f32 1.0, %v1212
    %v1214 = vtanh.pop %v1200
    %v1215 = vxor.u32 %v1201, 2147483648
    %v1216 = vmul.f32 %v1215, 1.442695
    %v1217 = vpow.pop %v1216
    %v1218 = vadd.f32 %v1217, 1.0
    %v1219 = vrcp.pop %v1218
    %v1220 = vmul.f32 1.0, %v1219
    %v1221 = vmul.f32 %v1213, %v1042
    %v1222 = vmul.f32 %v1211, %v1214
    %v1223 = vadd.f32 %v1221, %v1222
    %v1224 = vtanh.pop %v1223
    %v1225 = vmul.f32 %v1220, %v1224
    %s1226 = scalar_lea.vmem [#allocation12], 120
    %1227 = vst [vmem:[%s1226] sm:$0xff] %v1213
    %1228 = vst [vmem:[%s1226 + $0x8] sm:$0xff] %v1225
    %1229 = vst [vmem:[%s1226 + $0x10] sm:$0xff] %v1214
    %s1230 = scalar_lea.vmem [#allocation4], 96
    %v1231 = vld [vmem:[%s1230] sm:$0xff]
    %v1232 = vld [vmem:[%s1230 + $0x8] sm:$0xff]
    %v1233 = vunpack.c.l.bf16 %v1231
    %v1234 = vunpack.c.h.bf16 %v1231
    %v1235 = vunpack.c.l.bf16 %v1232
    %v1236 = vunpack.c.h.bf16 %v1232
    %1237 = vmatprep.subr.mxu0 %v141
    %1238 = vmatpush1.msra.mxu0 %v140
    %1239 = vmatprep.subr.mxu0 %v137
    %1240 = vmatpush1.msra.mxu0 %v136
    %1241 = vmatprep.subr.mxu0 %v133
    %1242 = vmatpush1.msra.mxu0 %v132
    %1243 = vmatprep.subr.mxu0 %v129
    %1244 = vmatpush1.msra.mxu0 %v128
    %1245 = vmatprep.subr.mxu0 %v125
    %1246 = vmatpush1.msra.mxu0 %v124
    %1247 = vmatprep.subr.mxu0 %v121
    %1248 = vmatpush1.msra.mxu0 %v120
    %1249 = vmatprep.subr.mxu0 %v117
    %1250 = vmatpush1.msra.mxu0 %v116
    %1251 = vmatprep.subr.mxu0 %v113
    %1252 = vmatpush1.msra.mxu0 %v112
    %1253 = vmatprep.subr.mxu0 %v109
    %1254 = vmatpush1.msra.mxu0 %v108
    %1255 = vmatprep.subr.mxu0 %v105
    %1256 = vmatpush1.msra.mxu0 %v104
    %1257 = vmatprep.subr.mxu0 %v101
    %1258 = vmatpush1.msra.mxu0 %v100
    %1259 = vmatprep.subr.mxu0 %v97
    %1260 = vmatpush1.msra.mxu0 %v96
    %1261 = vmatprep.subr.mxu0 %v93
    %1262 = vmatpush1.msra.mxu0 %v92
    %1263 = vmatprep.subr.mxu0 %v89
    %1264 = vmatpush1.msra.mxu0 %v88
    %1265 = vmatprep.subr.mxu0 %v85
    %1266 = vmatpush1.msra.mxu0 %v84
    %1267 = vmatprep.subr.mxu0 %v81
    %1268 = vmatpush1.msra.mxu0 %v80
    %1269 = vmatprep.subr.mxu0 0.0
    %1270 = vmatpush2.msra.mxu0 0.0
    %1271 = vmatprep.subr.mxu0 0.0
    %1272 = vmatpush2.msra.mxu0 0.0
    %1273 = vmatprep.subr.mxu0 0.0
    %1274 = vmatpush2.msra.mxu0 0.0
    %1275 = vmatprep.subr.mxu0 0.0
    %1276 = vmatpush2.msra.mxu0 0.0
    %1277 = vmatprep.subr.mxu0 0.0
    %1278 = vmatpush2.msra.mxu0 0.0
    %1279 = vmatprep.subr.mxu0 0.0
    %1280 = vmatpush2.msra.mxu0 0.0
    %1281 = vmatprep.subr.mxu0 0.0
    %1282 = vmatpush2.msra.mxu0 0.0
    %1283 = vmatprep.subr.mxu0 0.0
    %1284 = vmatpush2.msra.mxu0 0.0
    %1285 = vmatprep.subr.mxu0 0.0
    %1286 = vmatpush2.msra.mxu0 0.0
    %1287 = vmatprep.subr.mxu0 0.0
    %1288 = vmatpush2.msra.mxu0 0.0
    %1289 = vmatprep.subr.mxu0 0.0
    %1290 = vmatpush2.msra.mxu0 0.0
    %1291 = vmatprep.subr.mxu0 0.0
    %1292 = vmatpush2.msra.mxu0 0.0
    %1293 = vmatprep.subr.mxu0 0.0
    %1294 = vmatpush2.msra.mxu0 0.0
    %1295 = vmatprep.subr.mxu0 0.0
    %1296 = vmatpush2.msra.mxu0 0.0
    %1297 = vmatprep.subr.mxu0 0.0
    %1298 = vmatpush2.msra.mxu0 0.0
    %1299 = vmatprep.subr.mxu0 0.0
    %1300 = vmatpush2.msra.mxu0 0.0
    %1301 = vmatprep.mubr.f32.mxu0 0.0
    %1302 = vmatmul.mubr.f32.gmra.mxu0 %v1225
    %v1303 = vpop.f32.mrf.mxu0
    %v1304 = vadd.f32 0.0, %v1303
    %v1305 = vpop.f32.mrf.mxu0
    %v1306 = vadd.f32 0.0, %v1305
    %1307 = vdwg.mxu0
    %1308 = vmatprep.subr.mxu0 %v143
    %1309 = vmatpush1.msra.mxu0 %v142
    %1310 = vmatprep.subr.mxu0 %v139
    %1311 = vmatpush1.msra.mxu0 %v138
    %1312 = vmatprep.subr.mxu0 %v135
    %1313 = vmatpush1.msra.mxu0 %v134
    %1314 = vmatprep.subr.mxu0 %v131
    %1315 = vmatpush1.msra.mxu0 %v130
    %1316 = vmatprep.subr.mxu0 %v127
    %1317 = vmatpush1.msra.mxu0 %v126
    %1318 = vmatprep.subr.mxu0 %v123
    %1319 = vmatpush1.msra.mxu0 %v122
    %1320 = vmatprep.subr.mxu0 %v119
    %1321 = vmatpush1.msra.mxu0 %v118
    %1322 = vmatprep.subr.mxu0 %v115
    %1323 = vmatpush1.msra.mxu0 %v114
    %1324 = vmatprep.subr.mxu0 %v111
    %1325 = vmatpush1.msra.mxu0 %v110
    %1326 = vmatprep.subr.mxu0 %v107
    %1327 = vmatpush1.msra.mxu0 %v106
    %1328 = vmatprep.subr.mxu0 %v103
    %1329 = vmatpush1.msra.mxu0 %v102
    %1330 = vmatprep.subr.mxu0 %v99
    %1331 = vmatpush1.msra.mxu0 %v98
    %1332 = vmatprep.subr.mxu0 %v95
    %1333 = vmatpush1.msra.mxu0 %v94
    %1334 = vmatprep.subr.mxu0 %v91
    %1335 = vmatpush1.msra.mxu0 %v90
    %1336 = vmatprep.subr.mxu0 %v87
    %1337 = vmatpush1.msra.mxu0 %v86
    %1338 = vmatprep.subr.mxu0 %v83
    %1339 = vmatpush1.msra.mxu0 %v82
    %1340 = vmatprep.subr.mxu0 0.0
    %1341 = vmatpush2.msra.mxu0 0.0
    %1342 = vmatprep.subr.mxu0 0.0
    %1343 = vmatpush2.msra.mxu0 0.0
    %1344 = vmatprep.subr.mxu0 0.0
    %1345 = vmatpush2.msra.mxu0 0.0
    %1346 = vmatprep.subr.mxu0 0.0
    %1347 = vmatpush2.msra.mxu0 0.0
    %1348 = vmatprep.subr.mxu0 0.0
    %1349 = vmatpush2.msra.mxu0 0.0
    %1350 = vmatprep.subr.mxu0 0.0
    %1351 = vmatpush2.msra.mxu0 0.0
    %1352 = vmatprep.subr.mxu0 0.0
    %1353 = vmatpush2.msra.mxu0 0.0
    %1354 = vmatprep.subr.mxu0 0.0
    %1355 = vmatpush2.msra.mxu0 0.0
    %1356 = vmatprep.subr.mxu0 0.0
    %1357 = vmatpush2.msra.mxu0 0.0
    %1358 = vmatprep.subr.mxu0 0.0
    %1359 = vmatpush2.msra.mxu0 0.0
    %1360 = vmatprep.subr.mxu0 0.0
    %1361 = vmatpush2.msra.mxu0 0.0
    %1362 = vmatprep.subr.mxu0 0.0
    %1363 = vmatpush2.msra.mxu0 0.0
    %1364 = vmatprep.subr.mxu0 0.0
    %1365 = vmatpush2.msra.mxu0 0.0
    %1366 = vmatprep.subr.mxu0 0.0
    %1367 = vmatpush2.msra.mxu0 0.0
    %1368 = vmatprep.subr.mxu0 0.0
    %1369 = vmatpush2.msra.mxu0 0.0
    %1370 = vmatprep.subr.mxu0 0.0
    %1371 = vmatpush2.msra.mxu0 0.0
    %1372 = vmatprep.mubr.f32.mxu0 0.0
    %1373 = vmatmul.mubr.f32.gmra.mxu0 %v1225
    %v1374 = vpop.f32.mrf.mxu0
    %v1375 = vadd.f32 0.0, %v1374
    %v1376 = vpop.f32.mrf.mxu0
    %v1377 = vadd.f32 0.0, %v1376
    %1378 = vdwg.mxu0
    %v1379 = vadd.f32 %v1233, %v1304
    %v1380 = vadd.f32 %v1234, %v1306
    %v1381 = vadd.f32 %v1235, %v1375
    %v1382 = vadd.f32 %v1236, %v1377
    %v1383 = vxor.u32 %v1379, 2147483648
    %v1384 = vxor.u32 %v1380, 2147483648
    %v1385 = vmul.f32 %v1383, 1.442695
    %v1386 = vpow.pop %v1385
    %v1387 = vmul.f32 %v1384, 1.442695
    %v1388 = vpow.pop %v1387
    %v1389 = vadd.f32 %v1386, 1.0
    %v1390 = vadd.f32 %v1388, 1.0
    %v1391 = vrcp.pop %v1389
    %v1392 = vmul.f32 1.0, %v1391
    %v1393 = vrcp.pop %v1390
    %v1394 = vmul.f32 1.0, %v1393
    %v1395 = vtanh.pop %v1381
    %v1396 = vxor.u32 %v1382, 2147483648
    %v1397 = vmul.f32 %v1396, 1.442695
    %v1398 = vpow.pop %v1397
    %v1399 = vadd.f32 %v1398, 1.0
    %v1400 = vrcp.pop %v1399
    %v1401 = vmul.f32 1.0, %v1400
    %v1402 = vmul.f32 %v1394, %v1223
    %v1403 = vmul.f32 %v1392, %v1395
    %v1404 = vadd.f32 %v1402, %v1403
    %v1405 = vtanh.pop %v1404
    %v1406 = vmul.f32 %v1401, %v1405
    %s1407 = scalar_lea.vmem [#allocation12], 144
    %1408 = vst [vmem:[%s1407] sm:$0xff] %v1394
    %1409 = vst [vmem:[%s1407 + $0x8] sm:$0xff] %v1406
    %1410 = vst [vmem:[%s1407 + $0x10] sm:$0xff] %v1395
    %s1411 = scalar_lea.vmem [#allocation4], 112
    %v1412 = vld [vmem:[%s1411] sm:$0xff]
    %v1413 = vld [vmem:[%s1411 + $0x8] sm:$0xff]
    %v1414 = vunpack.c.l.bf16 %v1412
    %v1415 = vunpack.c.h.bf16 %v1412
    %v1416 = vunpack.c.l.bf16 %v1413
    %v1417 = vunpack.c.h.bf16 %v1413
    %1418 = vmatprep.subr.mxu0 %v141
    %1419 = vmatpush1.msra.mxu0 %v140
    %1420 = vmatprep.subr.mxu0 %v137
    %1421 = vmatpush1.msra.mxu0 %v136
    %1422 = vmatprep.subr.mxu0 %v133
    %1423 = vmatpush1.msra.mxu0 %v132
    %1424 = vmatprep.subr.mxu0 %v129
    %1425 = vmatpush1.msra.mxu0 %v128
    %1426 = vmatprep.subr.mxu0 %v125
    %1427 = vmatpush1.msra.mxu0 %v124
    %1428 = vmatprep.subr.mxu0 %v121
    %1429 = vmatpush1.msra.mxu0 %v120
    %1430 = vmatprep.subr.mxu0 %v117
    %1431 = vmatpush1.msra.mxu0 %v116
    %1432 = vmatprep.subr.mxu0 %v113
    %1433 = vmatpush1.msra.mxu0 %v112
    %1434 = vmatprep.subr.mxu0 %v109
    %1435 = vmatpush1.msra.mxu0 %v108
    %1436 = vmatprep.subr.mxu0 %v105
    %1437 = vmatpush1.msra.mxu0 %v104
    %1438 = vmatprep.subr.mxu0 %v101
    %1439 = vmatpush1.msra.mxu0 %v100
    %1440 = vmatprep.subr.mxu0 %v97
    %1441 = vmatpush1.msra.mxu0 %v96
    %1442 = vmatprep.subr.mxu0 %v93
    %1443 = vmatpush1.msra.mxu0 %v92
    %1444 = vmatprep.subr.mxu0 %v89
    %1445 = vmatpush1.msra.mxu0 %v88
    %1446 = vmatprep.subr.mxu0 %v85
    %1447 = vmatpush1.msra.mxu0 %v84
    %1448 = vmatprep.subr.mxu0 %v81
    %1449 = vmatpush1.msra.mxu0 %v80
    %1450 = vmatprep.subr.mxu0 0.0
    %1451 = vmatpush2.msra.mxu0 0.0
    %1452 = vmatprep.subr.mxu0 0.0
    %1453 = vmatpush2.msra.mxu0 0.0
    %1454 = vmatprep.subr.mxu0 0.0
    %1455 = vmatpush2.msra.mxu0 0.0
    %1456 = vmatprep.subr.mxu0 0.0
    %1457 = vmatpush2.msra.mxu0 0.0
    %1458 = vmatprep.subr.mxu0 0.0
    %1459 = vmatpush2.msra.mxu0 0.0
    %1460 = vmatprep.subr.mxu0 0.0
    %1461 = vmatpush2.msra.mxu0 0.0
    %1462 = vmatprep.subr.mxu0 0.0
    %1463 = vmatpush2.msra.mxu0 0.0
    %1464 = vmatprep.subr.mxu0 0.0
    %1465 = vmatpush2.msra.mxu0 0.0
    %1466 = vmatprep.subr.mxu0 0.0
    %1467 = vmatpush2.msra.mxu0 0.0
    %1468 = vmatprep.subr.mxu0 0.0
    %1469 = vmatpush2.msra.mxu0 0.0
    %1470 = vmatprep.subr.mxu0 0.0
    %1471 = vmatpush2.msra.mxu0 0.0
    %1472 = vmatprep.subr.mxu0 0.0
    %1473 = vmatpush2.msra.mxu0 0.0
    %1474 = vmatprep.subr.mxu0 0.0
    %1475 = vmatpush2.msra.mxu0 0.0
    %1476 = vmatprep.subr.mxu0 0.0
    %1477 = vmatpush2.msra.mxu0 0.0
    %1478 = vmatprep.subr.mxu0 0.0
    %1479 = vmatpush2.msra.mxu0 0.0
    %1480 = vmatprep.subr.mxu0 0.0
    %1481 = vmatpush2.msra.mxu0 0.0
    %1482 = vmatprep.mubr.f32.mxu0 0.0
    %1483 = vmatmul.mubr.f32.gmra.mxu0 %v1406
    %v1484 = vpop.f32.mrf.mxu0
    %v1485 = vadd.f32 0.0, %v1484
    %v1486 = vpop.f32.mrf.mxu0
    %v1487 = vadd.f32 0.0, %v1486
    %1488 = vdwg.mxu0
    %1489 = vmatprep.subr.mxu0 %v143
    %1490 = vmatpush1.msra.mxu0 %v142
    %1491 = vmatprep.subr.mxu0 %v139
    %1492 = vmatpush1.msra.mxu0 %v138
    %1493 = vmatprep.subr.mxu0 %v135
    %1494 = vmatpush1.msra.mxu0 %v134
    %1495 = vmatprep.subr.mxu0 %v131
    %1496 = vmatpush1.msra.mxu0 %v130
    %1497 = vmatprep.subr.mxu0 %v127
    %1498 = vmatpush1.msra.mxu0 %v126
    %1499 = vmatprep.subr.mxu0 %v123
    %1500 = vmatpush1.msra.mxu0 %v122
    %1501 = vmatprep.subr.mxu0 %v119
    %1502 = vmatpush1.msra.mxu0 %v118
    %1503 = vmatprep.subr.mxu0 %v115
    %1504 = vmatpush1.msra.mxu0 %v114
    %1505 = vmatprep.subr.mxu0 %v111
    %1506 = vmatpush1.msra.mxu0 %v110
    %1507 = vmatprep.subr.mxu0 %v107
    %1508 = vmatpush1.msra.mxu0 %v106
    %1509 = vmatprep.subr.mxu0 %v103
    %1510 = vmatpush1.msra.mxu0 %v102
    %1511 = vmatprep.subr.mxu0 %v99
    %1512 = vmatpush1.msra.mxu0 %v98
    %1513 = vmatprep.subr.mxu0 %v95
    %1514 = vmatpush1.msra.mxu0 %v94
    %1515 = vmatprep.subr.mxu0 %v91
    %1516 = vmatpush1.msra.mxu0 %v90
    %1517 = vmatprep.subr.mxu0 %v87
    %1518 = vmatpush1.msra.mxu0 %v86
    %1519 = vmatprep.subr.mxu0 %v83
    %1520 = vmatpush1.msra.mxu0 %v82
    %1521 = vmatprep.subr.mxu0 0.0
    %1522 = vmatpush2.msra.mxu0 0.0
    %1523 = vmatprep.subr.mxu0 0.0
    %1524 = vmatpush2.msra.mxu0 0.0
    %1525 = vmatprep.subr.mxu0 0.0
    %1526 = vmatpush2.msra.mxu0 0.0
    %1527 = vmatprep.subr.mxu0 0.0
    %1528 = vmatpush2.msra.mxu0 0.0
    %1529 = vmatprep.subr.mxu0 0.0
    %1530 = vmatpush2.msra.mxu0 0.0
    %1531 = vmatprep.subr.mxu0 0.0
    %1532 = vmatpush2.msra.mxu0 0.0
    %1533 = vmatprep.subr.mxu0 0.0
    %1534 = vmatpush2.msra.mxu0 0.0
    %1535 = vmatprep.subr.mxu0 0.0
    %1536 = vmatpush2.msra.mxu0 0.0
    %1537 = vmatprep.subr.mxu0 0.0
    %1538 = vmatpush2.msra.mxu0 0.0
    %1539 = vmatprep.subr.mxu0 0.0
    %1540 = vmatpush2.msra.mxu0 0.0
    %1541 = vmatprep.subr.mxu0 0.0
    %1542 = vmatpush2.msra.mxu0 0.0
    %1543 = vmatprep.subr.mxu0 0.0
    %1544 = vmatpush2.msra.mxu0 0.0
    %1545 = vmatprep.subr.mxu0 0.0
    %1546 = vmatpush2.msra.mxu0 0.0
    %1547 = vmatprep.subr.mxu0 0.0
    %1548 = vmatpush2.msra.mxu0 0.0
    %1549 = vmatprep.subr.mxu0 0.0
    %1550 = vmatpush2.msra.mxu0 0.0
    %1551 = vmatprep.subr.mxu0 0.0
    %1552 = vmatpush2.msra.mxu0 0.0
    %1553 = vmatprep.mubr.f32.mxu0 0.0
    %1554 = vmatmul.mubr.f32.gmra.mxu0 %v1406
    %v1555 = vpop.f32.mrf.mxu0
    %v1556 = vadd.f32 0.0, %v1555
    %v1557 = vpop.f32.mrf.mxu0
    %v1558 = vadd.f32 0.0, %v1557
    %1559 = vdwg.mxu0
    %v1560 = vadd.f32 %v1414, %v1485
    %v1561 = vadd.f32 %v1415, %v1487
    %v1562 = vadd.f32 %v1416, %v1556
    %v1563 = vadd.f32 %v1417, %v1558
    %v1564 = vxor.u32 %v1560, 2147483648
    %v1565 = vxor.u32 %v1561, 2147483648
    %v1566 = vmul.f32 %v1564, 1.442695
    %v1567 = vpow.pop %v1566
    %v1568 = vmul.f32 %v1565, 1.442695
    %v1569 = vpow.pop %v1568
    %v1570 = vadd.f32 %v1567, 1.0
    %v1571 = vadd.f32 %v1569, 1.0
    %v1572 = vrcp.pop %v1570
    %v1573 = vmul.f32 1.0, %v1572
    %v1574 = vrcp.pop %v1571
    %v1575 = vmul.f32 1.0, %v1574
    %v1576 = vtanh.pop %v1562
    %v1577 = vxor.u32 %v1563, 2147483648
    %v1578 = vmul.f32 %v1577, 1.442695
    %v1579 = vpow.pop %v1578
    %v1580 = vadd.f32 %v1579, 1.0
    %v1581 = vrcp.pop %v1580
    %v1582 = vmul.f32 1.0, %v1581
    %v1583 = vmul.f32 %v1575, %v1404
    %v1584 = vmul.f32 %v1573, %v1576
    %v1585 = vadd.f32 %v1583, %v1584
    %v1586 = vtanh.pop %v1585
    %v1587 = vmul.f32 %v1582, %v1586
    %s1588 = scalar_lea.vmem [#allocation12], 168
    %1589 = vst [vmem:[%s1588] sm:$0xff] %v1575
    %1590 = vst [vmem:[%s1588 + $0x8] sm:$0xff] %v1587
    %1591 = vst [vmem:[%s1588 + $0x10] sm:$0xff] %v1576
    %1592 = vst [vmem:[#allocation2] sm:$0xff] %v1587
    %1593 = vst [vmem:[#allocation3] sm:$0xff] %v1585
    // Predicated region
    $region38: #{tpu_custom_call.1} parent=1 // pred_check
      %p1594 = pneg %p72
    $region39: #{tpu_custom_call.1} parent=1 // pred_check_branch
      %1596 = sbr.rel (%p1594) target = $region41
    $region40: #{tpu_custom_call.1} parent=1 // pred_region
      %1597 = vst [vmem:[#allocation13] sm:$0xff] %v1582
    $region41: #{tpu_custom_call.1} parent=1 // pred_fallthru
      _
    // Predicated region
    $region42: #{tpu_custom_call.1} parent=1 // pred_check
      _
    $region43: #{tpu_custom_call.1} parent=1 // pred_check_branch
      %1599 = sbr.rel (0) target = $region45
    $region44: #{tpu_custom_call.1} parent=1 // pred_region
      %s1601 = ssub.s32 3072, 3072
      %1602 = vsyncadd [#allocation6], %s1601
      %s1603 = sshll.u32 [#allocation12], 4
      %s1604 = int_to_ptr.vmem [resolvable:$true] %s1603
      %1609 = dma.vmem_to_hbm [thread:$0]  %s1604, 3072, %s4, [#allocation6], 384, 384, 24
    $region45: #{tpu_custom_call.1} parent=1 // pred_fallthru
      _
    // Predicated region
    $region46: #{tpu_custom_call.1} parent=1 // pred_check
      _
    $region47: #{tpu_custom_call.1} parent=1 // pred_check_branch
      %1611 = sbr.rel (0) target = $region49
    $region48: #{tpu_custom_call.1} parent=1 // pred_region
      %s1613 = ssub.s32 128, 128
      %1614 = vsyncadd [#allocation14], %s1613
      %s1616 = sshll.u32 [#allocation13], 4
      %s1617 = int_to_ptr.vmem [resolvable:$true] %s1616
      %1619 = dma.vmem_to_hbm [thread:$0]  %s1617, 128, %s5, [#allocation14]
    $region49: #{tpu_custom_call.1} parent=1 // pred_fallthru
      _
    // Predicated region
    $region50: #{tpu_custom_call.1} parent=1 // pred_check
      _
    $region51: #{tpu_custom_call.1} parent=1 // pred_check_branch
      %1621 = sbr.rel (0) target = $region53
    $region52: #{tpu_custom_call.1} parent=1 // pred_region
      %1622 = dma.done [#allocation6], 3072
    $region53: #{tpu_custom_call.1} parent=1 // pred_fallthru
      _
    // Predicated region
    $region54: #{tpu_custom_call.1} parent=1 // pred_check
      _
    $region55: #{tpu_custom_call.1} parent=1 // pred_check_branch
      %1624 = sbr.rel (0) target = $region57
    $region56: #{tpu_custom_call.1} parent=1 // pred_region
      %1625 = dma.done [#allocation14], 128
    $region57: #{tpu_custom_call.1} parent=1 // pred_fallthru
      _
    %1626 = vsyncpa [#allocation5], 1
    %1627 = vsyncpa [#allocation8], 1
    %1628 = vsyncpa [#allocation11], 1
    %1629 = vsyncpa [#allocation6], 1
    %1630 = vsyncpa [#allocation14], 1

</llo_original>
